<compile_context>
chip_gen: v7x
topology: tpu7x:2x2x1
jax: 0.10.0
libtpu: 0.0.40
codegen_flags: <defaults>
</compile_context>

<pallas_src>
from math import sqrt

import numpy as np
import jax
import jax.numpy as jnp
from jax import lax
from jax.experimental import pallas as pl
from jax.experimental.pallas import tpu as pltpu

# ---- module sizes (PFGRUCell defaults; small observation vector / short rollout) -----
N_PARTICLES = 40          # num_particles (module default)
HIDDEN = 64               # hidden_size   (module default)
INPUT_SIZE = 8            # input_size    (small observation vector)
CAT = HIDDEN + INPUT_SIZE
RESAMP_ALPHA = 0.7        # resamp_alpha  (module default)
SEQ_LEN = 8               # fused rollout length T

PACK = 128                # lane-dense packed per-step output row
IDX_OFF = 0               # lanes [0, 40)  : resampling indices (as f32 ints)
LOC_OFF = N_PARTICLES     # lanes [40, 42) : loc_pred


def _dot_nt(a, b, **kw):
    """a @ b.T as an MXU matmul with transposed RHS (no materialized transpose)."""
    return lax.dot_general(a, b, (((1,), (1,)), ((), ())),
                           preferred_element_type=jnp.float32, **kw)


# ------------------------------- Pallas kernel ----------------------------------------
def pfgru_kernel(obs_ref, h0_ref, p0_ref, eps_ref, u_ref,
                 wzr_h_ref, wzr_x_ref, bzr_ref,
                 wn_h_ref, wn_x_ref, bn_ref,
                 wobs_h_ref, w8_ref, b8_ref, w9p_ref, b9p_ref,
                 tri_ref, lane_ref, ei_ref,
                 h_out_ref, p_out_ref, packed_ref,
                 h_sc, p_sc, zrx_sc, nx_sc):
    t = pl.program_id(0)
    f32 = jnp.float32
    bf16 = jnp.bfloat16
    N, H = N_PARTICLES, HIDDEN

    # ---- one-time init: carries + obs-side projections for ALL T steps at once ------
    @pl.when(t == 0)
    def _init():
        h_sc[...] = h0_ref[...]                                       # (N, H)
        p_sc[...] = p0_ref[...]                                       # (1, N) log-weights
        obs = obs_ref[...]                                            # (T, I)
        zrx_sc[...] = jnp.dot(obs, wzr_x_ref[...],
                              preferred_element_type=f32) + bzr_ref[...]   # (T, 2H)
        nx_sc[...] = jnp.dot(obs, wn_x_ref[...],
                             preferred_element_type=f32) + bn_ref[...]     # (T, 2H)

    h0 = h_sc[...]                                                    # (N, H) f32
    p_prev = p_sc[...]                                                # (1, N) f32
    eps = eps_ref[0]                                                  # (N, H)
    u = u_ref[0]                                                      # (N, 1) uniforms

    zr_x = zrx_sc[pl.ds(t, 1), :]                                     # (1, 2H)
    n_x = nx_sc[pl.ds(t, 1), :]                                       # (1, 2H)

    # ---- packed gates [z | r]: one bf16 (N,H)@(H,2H) matmul --------------------------
    zr = jnp.dot(h0.astype(bf16), wzr_h_ref[...], preferred_element_type=f32) + zr_x
    zr = pl.reciprocal(1.0 + jnp.exp(-zr), approx=True)               # sigmoid via EUP vrcp
    z = zr[:, :H]
    r = zr[:, H:]

    # ---- candidate: fc_n([r*h, obs]) -> (mu, var); reparameterize; tanh --------------
    n1 = jnp.dot((r * h0).astype(bf16), wn_h_ref[...], preferred_element_type=f32) + n_x
    mu = n1[:, :H]
    var = n1[:, H:]
    std = jnp.where(var > 20.0, var,
                    jnp.log(1.0 + jnp.exp(jnp.minimum(var, 20.0))))   # softplus (f32)
    n = jnp.tanh(mu + eps * std)
    h1 = (1.0 - z) * n + z * h0                                       # (N, H) f32

    # ---- observation likelihood as normalized probabilities (lane-dense (1, N)) -----
    # obs/bias terms of fc_obs are identical for every particle -> cancel in log_softmax.
    logits = _dot_nt(wobs_h_ref[...], h1.astype(bf16)) + p_prev       # (1, N)
    m = jnp.max(logits, axis=-1, keepdims=True)
    e = jnp.exp(logits - m)
    probs = e * pl.reciprocal(jnp.sum(e, axis=-1, keepdims=True), approx=True)  # softmax
    w = RESAMP_ALPHA * probs + (1.0 - RESAMP_ALPHA) / N               # resampling dist.

    # ---- inverse-CDF multinomial; cumsum as a matmul vs hoisted triangular ones ------
    # bf16 hi/lo split keeps the cumsum effectively exact at DEFAULT MXU precision.
    w_hi = w.astype(bf16).astype(f32)
    w_lo = w - w_hi
    cdf = (jnp.dot(w_hi, tri_ref[...], preferred_element_type=f32)
           + jnp.dot(w_lo, tri_ref[...], preferred_element_type=f32))  # (1, N)
    hits = (u >= cdf).astype(f32)                                      # (N, N)
    idx = jnp.minimum(jnp.sum(hits, axis=-1, keepdims=True), float(N - 1))  # (N,1) exact ints
    onehot = (lane_ref[...] == idx).astype(f32)                        # (N, N): row k -> idx[k]

    # ---- gathers as matmuls ----------------------------------------------------------
    h1_new = jnp.dot(onehot.astype(bf16), h1.astype(bf16),
                     preferred_element_type=f32)                       # (N, H)
    probs_sel = _dot_nt(probs, onehot)                                 # (1, N) probs[idx]
    idx_row = _dot_nt(lane_ref[...], onehot)                           # (1, N) idx (exact)

    # ---- soft-resampling re-weighting (probabilities; one log at the end) ------------
    pn = probs_sel * pl.reciprocal(RESAMP_ALPHA * probs_sel
                                   + (1.0 - RESAMP_ALPHA) / N, approx=True)
    pn = pn / jnp.sum(pn, axis=-1, keepdims=True)                      # exact normalization
    p1_new = jnp.log(pn)                                               # (1, N) log-weights

    # ---- weighted mean + hid_obs MLP (Linear-ReLU-Linear-ReLU); W9/b9 pre-placed
    #      at lanes [LOC_OFF, LOC_OFF+2) of the 128-wide packed output row -------------
    mean_hid = jnp.dot(pn.astype(bf16), h1_new.astype(bf16),
                       preferred_element_type=f32)                     # (1, H)
    l1 = jnp.maximum(jnp.dot(mean_hid.astype(bf16), w8_ref[...],
                             preferred_element_type=f32) + b8_ref[...], 0.0)   # (1, 24)
    loc_row = jnp.maximum(jnp.dot(l1.astype(bf16), w9p_ref[...],
                                  preferred_element_type=f32) + b9p_ref[...], 0.0)  # (1,128)

    # ---- carries + outputs -----------------------------------------------------------
    h_sc[...] = h1_new
    p_sc[...] = p1_new
    h_out_ref[...] = h1_new                                            # final hidden (1 writeback)
    p_out_ref[...] = p1_new                                            # final log-weights
    idx_placed = jnp.dot(idx_row, ei_ref[...], preferred_element_type=f32)  # lanes [0,40)
    packed_ref[0] = idx_placed + loc_row                               # dense (1,128) per-step row


# ------------------------------- wrapper ----------------------------------------------
def pfgru_rollout(obs_seq, h0, p0, eps_seq, u_seq, kernel_params):
    """Fused T-step PFGRU rollout in a single pallas_call.
    obs_seq (T,I), h0 (N,H), p0 (N,1), eps_seq (T,N,H) normals, u_seq (T,N,1) uniforms.
    Returns (loc_steps (T,2), h_final (N,H), p_final (N,1), idx_steps (T,N) int32)."""
    T = obs_seq.shape[0]
    f32 = jnp.float32
    p0_row = p0.reshape(1, N_PARTICLES).astype(f32)
    inputs = (obs_seq, h0, p0_row, eps_seq, u_seq) + tuple(kernel_params)

    def _const(a):
        nd = a.ndim
        return pl.BlockSpec(a.shape, lambda t, _n=nd: (0,) * _n)

    in_specs = [
        _const(obs_seq),                                               # obs: resident
        _const(h0),                                                    # h0: resident
        _const(p0_row),                                                # p0: resident
        pl.BlockSpec((1, N_PARTICLES, HIDDEN), lambda t: (t, 0, 0)),   # eps: per-step
        pl.BlockSpec((1, N_PARTICLES, 1), lambda t: (t, 0, 0)),        # u:   per-step
    ] + [_const(p) for p in kernel_params]                             # weights: resident

    out_shape = (
        jax.ShapeDtypeStruct((N_PARTICLES, HIDDEN), f32),              # final h
        jax.ShapeDtypeStruct((1, N_PARTICLES), f32),                   # final log-weights
        jax.ShapeDtypeStruct((T, 1, PACK), f32),                       # packed per-step row
    )
    out_specs = (
        pl.BlockSpec((N_PARTICLES, HIDDEN), lambda t: (0, 0)),
        pl.BlockSpec((1, N_PARTICLES), lambda t: (0, 0)),
        pl.BlockSpec((1, 1, PACK), lambda t: (t, 0, 0)),
    )
    scratch_shapes = [
        pltpu.VMEM((N_PARTICLES, HIDDEN), f32),                        # h carry
        pltpu.VMEM((1, N_PARTICLES), f32),                             # p carry
        pltpu.VMEM((T, 2 * HIDDEN), f32),                              # obs-side zr preacts
        pltpu.VMEM((T, 2 * HIDDEN), f32),                              # obs-side n  preacts
    ]

    h_fin, p_fin, packed = pl.pallas_call(
        pfgru_kernel,
        out_shape=out_shape,
        grid=(T,),
        in_specs=in_specs,
        out_specs=out_specs,
        scratch_shapes=scratch_shapes,
        compiler_params=pltpu.CompilerParams(
            dimension_semantics=("arbitrary",),        # time recurrence
            vmem_limit_bytes=32 * 1024 * 1024),
    )(*inputs)

    packed = packed.reshape(T, PACK)
    idx_steps = packed[:, IDX_OFF:IDX_OFF + N_PARTICLES].astype(jnp.int32)
    loc_steps = packed[:, LOC_OFF:LOC_OFF + 2]
    return loc_steps, h_fin, p_fin.reshape(N_PARTICLES, 1), idx_steps


# -------------------- deterministic parameter init (torch layouts) --------------------
def init_params(key):
    ks = jax.random.split(key, 12)

    def u_init(k, shape, fan_in):
        b = 1.0 / sqrt(fan_in)
        return jax.random.uniform(k, shape, jnp.float32, -b, b)

    Wz = u_init(ks[0], (HIDDEN, CAT), CAT);      bz = u_init(ks[1], (HIDDEN,), CAT)
    Wr = u_init(ks[2], (HIDDEN, CAT), CAT);      br = u_init(ks[3], (HIDDEN,), CAT)
    Wn = u_init(ks[4], (2 * HIDDEN, CAT), CAT);  bn = u_init(ks[5], (2 * HIDDEN,), CAT)
    Wo = u_init(ks[6], (1, CAT), CAT);           bo = u_init(ks[7], (1,), CAT)
    W8 = u_init(ks[8], (24, HIDDEN), HIDDEN);    b8 = u_init(ks[9], (24,), HIDDEN)
    W9 = u_init(ks[10], (2, 24), 24);            b9 = u_init(ks[11], (2,), 24)
    torch_params = (Wz, bz, Wr, br, Wn, bn, Wo, bo, W8, b8, W9, b9)

    bf16 = jnp.bfloat16
    WzT, WrT, WnT = Wz.T, Wr.T, Wn.T
    wzr_h = jnp.concatenate([WzT[:HIDDEN], WrT[:HIDDEN]], axis=1).astype(bf16)   # (H, 2H)
    wzr_x = jnp.concatenate([WzT[HIDDEN:], WrT[HIDDEN:]], axis=1)                # (I, 2H)
    bzr = jnp.concatenate([bz, br]).reshape(1, 2 * HIDDEN)
    wn_h = WnT[:HIDDEN].astype(bf16)                                             # (H, 2H)
    wn_x = WnT[HIDDEN:]                                                          # (I, 2H)
    bn_row = bn.reshape(1, 2 * HIDDEN)
    wobs_h = Wo[:, :HIDDEN].astype(bf16)            # obs part + bias cancel in log_softmax

    w8 = W8.T.astype(bf16)                                                       # (H, 24)
    b8_row = b8.reshape(1, 24)
    # final Linear pre-placed into the packed-output lanes [LOC_OFF, LOC_OFF+2)
    w9p = np.zeros((24, PACK), np.float32); w9p[:, LOC_OFF:LOC_OFF + 2] = np.asarray(W9.T)
    b9p = np.zeros((1, PACK), np.float32);  b9p[0, LOC_OFF:LOC_OFF + 2] = np.asarray(b9)

    # hoisted constants: cumsum matrix, lane iota, idx placement matrix
    tri = np.triu(np.ones((N_PARTICLES, N_PARTICLES), np.float32))               # tri[j,i]=1, j<=i
    lane = np.arange(N_PARTICLES, dtype=np.float32).reshape(1, N_PARTICLES)
    e_i = np.zeros((N_PARTICLES, PACK), np.float32)
    e_i[np.arange(N_PARTICLES), IDX_OFF + np.arange(N_PARTICLES)] = 1.0

    kernel_params = (wzr_h, wzr_x, bzr, wn_h, wn_x, bn_row,
                     wobs_h, w8, b8_row,
                     jnp.asarray(w9p).astype(bf16), jnp.asarray(b9p),
                     jnp.asarray(tri), jnp.asarray(lane), jnp.asarray(e_i))
    return torch_params, kernel_params


# ---------------------------- pure-JAX reference --------------------------------------
def reference_rollout(obs_seq, h0, p0, eps_seq, torch_params, idx_steps):
    """Faithful per-step module math; uses the kernel's sampled indices so the check is
    robust to precision-induced flips exactly at the inverse-CDF thresholds."""
    Wz, bz, Wr, br, Wn, bn, Wo, bo, W8, b8, W9, b9 = torch_params
    N, H = N_PARTICLES, HIDDEN
    h, p = h0, p0
    locs = []
    for t in range(obs_seq.shape[0]):
        obs_in = jnp.broadcast_to(obs_seq[t].reshape(1, INPUT_SIZE), (N, INPUT_SIZE))
        obs_cat = jnp.concatenate([h, obs_in], axis=1)
        z = jax.nn.sigmoid(obs_cat @ Wz.T + bz)
        r = jax.nn.sigmoid(obs_cat @ Wr.T + br)
        n1 = jnp.concatenate([r * h, obs_in], axis=1) @ Wn.T + bn
        mu, var = n1[:, :H], n1[:, H:]
        n = jnp.tanh(mu + eps_seq[t] * jax.nn.softplus(var))
        h1 = (1.0 - z) * n + z * h
        logpdf = jnp.concatenate([h1, obs_in], axis=1) @ Wo.T + bo
        p1 = jax.nn.log_softmax(logpdf + p, axis=0)
        idx = idx_steps[t]
        h1n = h1[idx]
        pe = jnp.exp(p1[idx])
        pn = pe / (RESAMP_ALPHA * pe + (1.0 - RESAMP_ALPHA) / N)
        p1n = jax.nn.log_softmax(jnp.log(pn), axis=0)
        mean_hid = jnp.sum(jnp.exp(p1n) * h1n, axis=0)
        l1 = jnp.maximum(mean_hid @ W8.T + b8, 0.0)
        loc = jnp.maximum(l1 @ W9.T + b9, 0.0)
        locs.append(loc)
        h, p = h1n, p1n
    return jnp.stack(locs), h, p


if __name__ == "__main__":
    key = jax.random.PRNGKey(0)
    kp, kx, kh, ke, ku = jax.random.split(key, 5)
    torch_params, kernel_params = init_params(kp)

    T = SEQ_LEN
    obs_seq = jax.random.uniform(kx, (T, INPUT_SIZE), jnp.float32)
    h0 = jax.random.uniform(kh, (N_PARTICLES, HIDDEN), jnp.float32)     # init_hidden: torch.rand
    p0 = jnp.full((N_PARTICLES, 1), float(np.log(1.0 / N_PARTICLES)), jnp.float32)
    eps = jax.random.normal(ke, (T, N_PARTICLES, HIDDEN), jnp.float32)
    u = jax.random.uniform(ku, (T, N_PARTICLES, 1), jnp.float32)

    loc_k, h_k, p_k, idx_k = jax.block_until_ready(
        pfgru_rollout(obs_seq, h0, p0, eps, u, kernel_params))

    with jax.default_matmul_precision("highest"):
        loc_r, h_r, p_r = reference_rollout(obs_seq, h0, p0, eps, torch_params,
                                            np.asarray(idx_k))

    np.testing.assert_allclose(np.asarray(h_k), np.asarray(h_r), rtol=5e-2, atol=2.5e-2)
    np.testing.assert_allclose(np.asarray(p_k), np.asarray(p_r), rtol=5e-2, atol=2.5e-2)
    np.testing.assert_allclose(np.asarray(loc_k), np.asarray(loc_r), rtol=5e-2, atol=2.5e-2)
    assert loc_k.shape == (T, 2)
    assert abs(float(jnp.sum(jnp.exp(p_k))) - 1.0) < 1e-3               # weights normalized
    assert int(idx_k.min()) >= 0 and int(idx_k.max()) < N_PARTICLES

    print("KERNEL_OK")
</pallas_src>

<mosaic_0001>
module attributes {stable_mosaic.version = 11 : i64} {
  func.func @pfgru_kernel(%arg0: i32, %arg1: memref<8x8xf32, #tpu.memory_space<vmem>>, %arg2: memref<40x64xf32, #tpu.memory_space<vmem>>, %arg3: memref<1x40xf32, #tpu.memory_space<vmem>>, %arg4: memref<1x40x64xf32, #tpu.memory_space<vmem>>, %arg5: memref<1x40x1xf32, #tpu.memory_space<vmem>>, %arg6: memref<64x128xbf16, #tpu.memory_space<vmem>>, %arg7: memref<8x128xf32, #tpu.memory_space<vmem>>, %arg8: memref<1x128xf32, #tpu.memory_space<vmem>>, %arg9: memref<64x128xbf16, #tpu.memory_space<vmem>>, %arg10: memref<8x128xf32, #tpu.memory_space<vmem>>, %arg11: memref<1x128xf32, #tpu.memory_space<vmem>>, %arg12: memref<1x64xbf16, #tpu.memory_space<vmem>>, %arg13: memref<64x24xbf16, #tpu.memory_space<vmem>>, %arg14: memref<1x24xf32, #tpu.memory_space<vmem>>, %arg15: memref<24x128xbf16, #tpu.memory_space<vmem>>, %arg16: memref<1x128xf32, #tpu.memory_space<vmem>>, %arg17: memref<40x40xf32, #tpu.memory_space<vmem>>, %arg18: memref<1x40xf32, #tpu.memory_space<vmem>>, %arg19: memref<40x128xf32, #tpu.memory_space<vmem>>, %arg20: memref<40x64xf32, #tpu.memory_space<vmem>>, %arg21: memref<1x40xf32, #tpu.memory_space<vmem>>, %arg22: memref<1x1x128xf32, #tpu.memory_space<vmem>>, %arg23: memref<40x64xf32, #tpu.memory_space<vmem>>, %arg24: memref<1x40xf32, #tpu.memory_space<vmem>>, %arg25: memref<8x128xf32, #tpu.memory_space<vmem>>, %arg26: memref<8x128xf32, #tpu.memory_space<vmem>>) attributes {dimension_semantics = [#tpu.dimension_semantics<arbitrary>], iteration_bounds = array<i64: 8>, scalar_prefetch = 0 : i64, scratch_operands = 4 : i64, tpu.core_type = #tpu.core_type<tc>, window_params = [{pipeline_mode = #tpu.pipeline_mode<synchronous>, transform_indices = @transform_0, window_bounds = array<i64: 8, 8>}, {pipeline_mode = #tpu.pipeline_mode<synchronous>, transform_indices = @transform_1, window_bounds = array<i64: 40, 64>}, {pipeline_mode = #tpu.pipeline_mode<synchronous>, transform_indices = @transform_2, window_bounds = array<i64: 1, 40>}, {transform_indices = @transform_3, window_bounds = array<i64: 1, 40, 64>}, {transform_indices = @transform_4, window_bounds = array<i64: 1, 40, 1>}, {pipeline_mode = #tpu.pipeline_mode<synchronous>, transform_indices = @transform_5, window_bounds = array<i64: 64, 128>}, {pipeline_mode = #tpu.pipeline_mode<synchronous>, transform_indices = @transform_6, window_bounds = array<i64: 8, 128>}, {pipeline_mode = #tpu.pipeline_mode<synchronous>, transform_indices = @transform_7, window_bounds = array<i64: 1, 128>}, {pipeline_mode = #tpu.pipeline_mode<synchronous>, transform_indices = @transform_8, window_bounds = array<i64: 64, 128>}, {pipeline_mode = #tpu.pipeline_mode<synchronous>, transform_indices = @transform_9, window_bounds = array<i64: 8, 128>}, {pipeline_mode = #tpu.pipeline_mode<synchronous>, transform_indices = @transform_10, window_bounds = array<i64: 1, 128>}, {pipeline_mode = #tpu.pipeline_mode<synchronous>, transform_indices = @transform_11, window_bounds = array<i64: 1, 64>}, {pipeline_mode = #tpu.pipeline_mode<synchronous>, transform_indices = @transform_12, window_bounds = array<i64: 64, 24>}, {pipeline_mode = #tpu.pipeline_mode<synchronous>, transform_indices = @transform_13, window_bounds = array<i64: 1, 24>}, {pipeline_mode = #tpu.pipeline_mode<synchronous>, transform_indices = @transform_14, window_bounds = array<i64: 24, 128>}, {pipeline_mode = #tpu.pipeline_mode<synchronous>, transform_indices = @transform_15, window_bounds = array<i64: 1, 128>}, {pipeline_mode = #tpu.pipeline_mode<synchronous>, transform_indices = @transform_16, window_bounds = array<i64: 40, 40>}, {pipeline_mode = #tpu.pipeline_mode<synchronous>, transform_indices = @transform_17, window_bounds = array<i64: 1, 40>}, {pipeline_mode = #tpu.pipeline_mode<synchronous>, transform_indices = @transform_18, window_bounds = array<i64: 40, 128>}, {pipeline_mode = #tpu.pipeline_mode<synchronous>, transform_indices = @transform_19, window_bounds = array<i64: 40, 64>}, {pipeline_mode = #tpu.pipeline_mode<synchronous>, transform_indices = @transform_20, window_bounds = array<i64: 1, 40>}, {transform_indices = @transform_21, window_bounds = array<i64: 1, 1, 128>}]} {
    %c0_i32 = arith.constant 0 : i32
    %0 = arith.cmpi eq, %arg0, %c0_i32 : i32
    %1 = arith.extui %0 : i1 to i32
    %c0_i32_0 = arith.constant 0 : i32
    %2 = arith.cmpi ne, %1, %c0_i32_0 : i32
    scf.if %2 {
      %c0_75 = arith.constant 0 : index
      %c0_76 = arith.constant 0 : index
      %136 = vector.load %arg2[%c0_75, %c0_76] : memref<40x64xf32, #tpu.memory_space<vmem>>, vector<40x64xf32>
      %c0_77 = arith.constant 0 : index
      %c0_78 = arith.constant 0 : index
      %137 = vector.load %arg23[%c0_77, %c0_78] : memref<40x64xf32, #tpu.memory_space<vmem>>, vector<40x64xf32>
      tpu.vector_store %arg23[%c0_77, %c0_78], %136 {strides = array<i32>} : memref<40x64xf32, #tpu.memory_space<vmem>>, vector<40x64xf32>,
      %c0_79 = arith.constant 0 : index
      %c0_80 = arith.constant 0 : index
      %138 = vector.load %arg3[%c0_79, %c0_80] : memref<1x40xf32, #tpu.memory_space<vmem>>, vector<1x40xf32>
      %c0_81 = arith.constant 0 : index
      %c0_82 = arith.constant 0 : index
      %139 = vector.load %arg24[%c0_81, %c0_82] : memref<1x40xf32, #tpu.memory_space<vmem>>, vector<1x40xf32>
      tpu.vector_store %arg24[%c0_81, %c0_82], %138 {strides = array<i32>} : memref<1x40xf32, #tpu.memory_space<vmem>>, vector<1x40xf32>,
      %c0_83 = arith.constant 0 : index
      %c0_84 = arith.constant 0 : index
      %140 = vector.load %arg1[%c0_83, %c0_84] : memref<8x8xf32, #tpu.memory_space<vmem>>, vector<8x8xf32>
      %c0_85 = arith.constant 0 : index
      %c0_86 = arith.constant 0 : index
      %141 = vector.load %arg7[%c0_85, %c0_86] : memref<8x128xf32, #tpu.memory_space<vmem>>, vector<8x128xf32>
      %cst_87 = arith.constant dense<0.000000e+00> : vector<8x128xf32>
      %142 = tpu.matmul %140, %141, %cst_87 {dimension_numbers = #tpu.dot_dimension_numbers<[1], [0], [0], [1], [0, 0, 1, 1], [], []>} : vector<8x8xf32>, vector<8x128xf32>, vector<8x128xf32> -> vector<8x128xf32>
      %c0_88 = arith.constant 0 : index
      %c0_89 = arith.constant 0 : index
      %143 = vector.load %arg8[%c0_88, %c0_89] : memref<1x128xf32, #tpu.memory_space<vmem>>, vector<1x128xf32>
      %144 = vector.broadcast %143 : vector<1x128xf32> to vector<8x128xf32>
      %145 = arith.addf %142, %144 : vector<8x128xf32>
      %c0_90 = arith.constant 0 : index
      %c0_91 = arith.constant 0 : index
      %146 = vector.load %arg25[%c0_90, %c0_91] : memref<8x128xf32, #tpu.memory_space<vmem>>, vector<8x128xf32>
      tpu.vector_store %arg25[%c0_90, %c0_91], %145 {strides = array<i32>} : memref<8x128xf32, #tpu.memory_space<vmem>>, vector<8x128xf32>,
      %c0_92 = arith.constant 0 : index
      %c0_93 = arith.constant 0 : index
      %147 = vector.load %arg10[%c0_92, %c0_93] : memref<8x128xf32, #tpu.memory_space<vmem>>, vector<8x128xf32>
      %cst_94 = arith.constant dense<0.000000e+00> : vector<8x128xf32>
      %148 = tpu.matmul %140, %147, %cst_94 {dimension_numbers = #tpu.dot_dimension_numbers<[1], [0], [0], [1], [0, 0, 1, 1], [], []>} : vector<8x8xf32>, vector<8x128xf32>, vector<8x128xf32> -> vector<8x128xf32>
      %c0_95 = arith.constant 0 : index
      %c0_96 = arith.constant 0 : index
      %149 = vector.load %arg11[%c0_95, %c0_96] : memref<1x128xf32, #tpu.memory_space<vmem>>, vector<1x128xf32>
      %150 = vector.broadcast %149 : vector<1x128xf32> to vector<8x128xf32>
      %151 = arith.addf %148, %150 : vector<8x128xf32>
      %c0_97 = arith.constant 0 : index
      %c0_98 = arith.constant 0 : index
      %152 = vector.load %arg26[%c0_97, %c0_98] : memref<8x128xf32, #tpu.memory_space<vmem>>, vector<8x128xf32>
      tpu.vector_store %arg26[%c0_97, %c0_98], %151 {strides = array<i32>} : memref<8x128xf32, #tpu.memory_space<vmem>>, vector<8x128xf32>,
    } else {
    }
    %c0 = arith.constant 0 : index
    %c0_1 = arith.constant 0 : index
    %3 = vector.load %arg23[%c0, %c0_1] : memref<40x64xf32, #tpu.memory_space<vmem>>, vector<40x64xf32>
    %c0_2 = arith.constant 0 : index
    %c0_3 = arith.constant 0 : index
    %4 = vector.load %arg24[%c0_2, %c0_3] : memref<1x40xf32, #tpu.memory_space<vmem>>, vector<1x40xf32>
    %c0_4 = arith.constant 0 : index
    %c0_5 = arith.constant 0 : index
    %c0_6 = arith.constant 0 : index
    %5 = vector.load %arg4[%c0_4, %c0_5, %c0_6] : memref<1x40x64xf32, #tpu.memory_space<vmem>>, vector<1x40x64xf32>
    %6 = vector.shape_cast %5 : vector<1x40x64xf32> to vector<40x64xf32>
    %c0_7 = arith.constant 0 : index
    %c0_8 = arith.constant 0 : index
    %c0_9 = arith.constant 0 : index
    %7 = vector.load %arg5[%c0_7, %c0_8, %c0_9] : memref<1x40x1xf32, #tpu.memory_space<vmem>>, vector<1x40x1xf32>
    %8 = vector.shape_cast %7 : vector<1x40x1xf32> to vector<40x1xf32>
    %9 = arith.index_cast %arg0 : i32 to index
    %c0_10 = arith.constant 0 : index
    %10 = vector.load %arg25[%9, %c0_10] : memref<8x128xf32, #tpu.memory_space<vmem>>, vector<1x128xf32>
    %11 = arith.index_cast %arg0 : i32 to index
    %c0_11 = arith.constant 0 : index
    %12 = vector.load %arg26[%11, %c0_11] : memref<8x128xf32, #tpu.memory_space<vmem>>, vector<1x128xf32>
    %13 = arith.truncf %3 : vector<40x64xf32> to vector<40x64xbf16>
    %c0_12 = arith.constant 0 : index
    %c0_13 = arith.constant 0 : index
    %14 = vector.load %arg6[%c0_12, %c0_13] : memref<64x128xbf16, #tpu.memory_space<vmem>>, vector<64x128xbf16>
    %cst = arith.constant dense<0.000000e+00> : vector<40x128xf32>
    %15 = tpu.matmul %13, %14, %cst {dimension_numbers = #tpu.dot_dimension_numbers<[1], [0], [0], [1], [0, 0, 1, 1], [], []>} : vector<40x64xbf16>, vector<64x128xbf16>, vector<40x128xf32> -> vector<40x128xf32>
    %16 = vector.broadcast %10 : vector<1x128xf32> to vector<40x128xf32>
    %17 = arith.addf %15, %16 : vector<40x128xf32>
    %cst_14 = arith.constant 0.000000e+00 : f32
    %18 = vector.broadcast %cst_14 : f32 to vector<40x128xf32>
    %19 = arith.subf %18, %17 : vector<40x128xf32>
    %20 = math.exp %19 : vector<40x128xf32>
    %cst_15 = arith.constant 1.000000e+00 : f32
    %21 = vector.broadcast %cst_15 : f32 to vector<40x128xf32>
    %22 = arith.addf %21, %20 : vector<40x128xf32>
    %23 = tpu.reciprocal %22 {approx = true} : vector<40x128xf32> -> vector<40x128xf32>
    %24 = vector.extract_strided_slice %23 {offsets = [0, 0], sizes = [40, 64], strides = [1, 1]} : vector<40x128xf32> to vector<40x64xf32>
    %25 = vector.extract_strided_slice %23 {offsets = [0, 64], sizes = [40, 64], strides = [1, 1]} : vector<40x128xf32> to vector<40x64xf32>
    %26 = arith.mulf %25, %3 : vector<40x64xf32>
    %27 = arith.truncf %26 : vector<40x64xf32> to vector<40x64xbf16>
    %c0_16 = arith.constant 0 : index
    %c0_17 = arith.constant 0 : index
    %28 = vector.load %arg9[%c0_16, %c0_17] : memref<64x128xbf16, #tpu.memory_space<vmem>>, vector<64x128xbf16>
    %cst_18 = arith.constant dense<0.000000e+00> : vector<40x128xf32>
    %29 = tpu.matmul %27, %28, %cst_18 {dimension_numbers = #tpu.dot_dimension_numbers<[1], [0], [0], [1], [0, 0, 1, 1], [], []>} : vector<40x64xbf16>, vector<64x128xbf16>, vector<40x128xf32> -> vector<40x128xf32>
    %30 = vector.broadcast %12 : vector<1x128xf32> to vector<40x128xf32>
    %31 = arith.addf %29, %30 : vector<40x128xf32>
    %32 = vector.extract_strided_slice %31 {offsets = [0, 0], sizes = [40, 64], strides = [1, 1]} : vector<40x128xf32> to vector<40x64xf32>
    %33 = vector.extract_strided_slice %31 {offsets = [0, 64], sizes = [40, 64], strides = [1, 1]} : vector<40x128xf32> to vector<40x64xf32>
    %cst_19 = arith.constant 2.000000e+01 : f32
    %34 = vector.broadcast %cst_19 : f32 to vector<40x64xf32>
    %35 = arith.cmpf ogt, %33, %34 : vector<40x64xf32>
    %cst_20 = arith.constant 2.000000e+01 : f32
    %36 = vector.broadcast %cst_20 : f32 to vector<40x64xf32>
    %37 = arith.minimumf %33, %36 : vector<40x64xf32>
    %38 = math.exp %37 : vector<40x64xf32>
    %cst_21 = arith.constant 1.000000e+00 : f32
    %39 = vector.broadcast %cst_21 : f32 to vector<40x64xf32>
    %40 = arith.addf %39, %38 : vector<40x64xf32>
    %41 = math.log %40 : vector<40x64xf32>
    %42 = arith.select %35, %33, %41 : vector<40x64xi1>, vector<40x64xf32>
    %43 = arith.mulf %6, %42 : vector<40x64xf32>
    %44 = arith.addf %32, %43 : vector<40x64xf32>
    %45 = math.tanh %44 : vector<40x64xf32>
    %cst_22 = arith.constant 1.000000e+00 : f32
    %46 = vector.broadcast %cst_22 : f32 to vector<40x64xf32>
    %47 = arith.subf %46, %24 : vector<40x64xf32>
    %48 = arith.mulf %47, %45 : vector<40x64xf32>
    %49 = arith.mulf %24, %3 : vector<40x64xf32>
    %50 = arith.addf %48, %49 : vector<40x64xf32>
    %c0_23 = arith.constant 0 : index
    %c0_24 = arith.constant 0 : index
    %51 = vector.load %arg12[%c0_23, %c0_24] : memref<1x64xbf16, #tpu.memory_space<vmem>>, vector<1x64xbf16>
    %52 = arith.truncf %50 : vector<40x64xf32> to vector<40x64xbf16>
    %cst_25 = arith.constant dense<0.000000e+00> : vector<1x40xf32>
    %53 = tpu.matmul %51, %52, %cst_25 {dimension_numbers = #tpu.dot_dimension_numbers<[1], [1], [0], [0], [0, 0, 1, 0], [], []>} : vector<1x64xbf16>, vector<40x64xbf16>, vector<1x40xf32> -> vector<1x40xf32>
    %54 = arith.addf %53, %4 : vector<1x40xf32>
    %cst_26 = arith.constant dense<0xFF800000> : vector<1xf32>
    %55 = vector.multi_reduction <maximumf>, %54, %cst_26 [1] : vector<1x40xf32> to vector<1xf32>
    %56 = vector.shape_cast %55 : vector<1xf32> to vector<1x1xf32>
    %57 = vector.broadcast %56 : vector<1x1xf32> to vector<1x40xf32>
    %58 = arith.subf %54, %57 : vector<1x40xf32>
    %59 = math.exp %58 : vector<1x40xf32>
    %cst_27 = arith.constant dense<0.000000e+00> : vector<1xf32>
    %60 = vector.multi_reduction <add>, %59, %cst_27 [1] : vector<1x40xf32> to vector<1xf32>
    %61 = vector.shape_cast %60 : vector<1xf32> to vector<1x1xf32>
    %62 = tpu.reciprocal %61 {approx = true} : vector<1x1xf32> -> vector<1x1xf32>
    %63 = vector.broadcast %62 : vector<1x1xf32> to vector<1x40xf32>
    %64 = arith.mulf %59, %63 : vector<1x40xf32>
    %cst_28 = arith.constant 0.699999988 : f32
    %65 = vector.broadcast %cst_28 : f32 to vector<1x40xf32>
    %66 = arith.mulf %65, %64 : vector<1x40xf32>
    %cst_29 = arith.constant 7.500000e-03 : f32
    %67 = vector.broadcast %cst_29 : f32 to vector<1x40xf32>
    %68 = arith.addf %66, %67 : vector<1x40xf32>
    %69 = arith.truncf %68 : vector<1x40xf32> to vector<1x40xbf16>
    %70 = arith.extf %69 : vector<1x40xbf16> to vector<1x40xf32>
    %71 = arith.subf %68, %70 : vector<1x40xf32>
    %c0_30 = arith.constant 0 : index
    %c0_31 = arith.constant 0 : index
    %72 = vector.load %arg17[%c0_30, %c0_31] : memref<40x40xf32, #tpu.memory_space<vmem>>, vector<40x40xf32>
    %cst_32 = arith.constant dense<0.000000e+00> : vector<1x40xf32>
    %73 = tpu.matmul %70, %72, %cst_32 {dimension_numbers = #tpu.dot_dimension_numbers<[1], [0], [0], [1], [0, 0, 1, 1], [], []>} : vector<1x40xf32>, vector<40x40xf32>, vector<1x40xf32> -> vector<1x40xf32>
    %c0_33 = arith.constant 0 : index
    %c0_34 = arith.constant 0 : index
    %74 = vector.load %arg17[%c0_33, %c0_34] : memref<40x40xf32, #tpu.memory_space<vmem>>, vector<40x40xf32>
    %cst_35 = arith.constant dense<0.000000e+00> : vector<1x40xf32>
    %75 = tpu.matmul %71, %74, %cst_35 {dimension_numbers = #tpu.dot_dimension_numbers<[1], [0], [0], [1], [0, 0, 1, 1], [], []>} : vector<1x40xf32>, vector<40x40xf32>, vector<1x40xf32> -> vector<1x40xf32>
    %76 = arith.addf %73, %75 : vector<1x40xf32>
    %77 = vector.broadcast %8 : vector<40x1xf32> to vector<40x40xf32>
    %78 = vector.broadcast %76 : vector<1x40xf32> to vector<40x40xf32>
    %79 = arith.cmpf oge, %77, %78 : vector<40x40xf32>
    %80 = arith.extui %79 : vector<40x40xi1> to vector<40x40xi32>
    %81 = arith.sitofp %80 : vector<40x40xi32> to vector<40x40xf32>
    %cst_36 = arith.constant dense<0.000000e+00> : vector<40xf32>
    %82 = vector.multi_reduction <add>, %81, %cst_36 [1] : vector<40x40xf32> to vector<40xf32>
    %83 = vector.shape_cast %82 : vector<40xf32> to vector<40x1xf32>
    %cst_37 = arith.constant 3.900000e+01 : f32
    %84 = vector.broadcast %cst_37 : f32 to vector<40x1xf32>
    %85 = arith.minimumf %83, %84 : vector<40x1xf32>
    %c0_38 = arith.constant 0 : index
    %c0_39 = arith.constant 0 : index
    %86 = vector.load %arg18[%c0_38, %c0_39] : memref<1x40xf32, #tpu.memory_space<vmem>>, vector<1x40xf32>
    %87 = vector.broadcast %86 : vector<1x40xf32> to vector<40x40xf32>
    %88 = vector.broadcast %85 : vector<40x1xf32> to vector<40x40xf32>
    %89 = arith.cmpf oeq, %87, %88 : vector<40x40xf32>
    %90 = arith.extui %89 : vector<40x40xi1> to vector<40x40xi32>
    %91 = arith.sitofp %90 : vector<40x40xi32> to vector<40x40xf32>
    %92 = arith.truncf %91 : vector<40x40xf32> to vector<40x40xbf16>
    %93 = arith.truncf %50 : vector<40x64xf32> to vector<40x64xbf16>
    %cst_40 = arith.constant dense<0.000000e+00> : vector<40x64xf32>
    %94 = tpu.matmul %92, %93, %cst_40 {dimension_numbers = #tpu.dot_dimension_numbers<[1], [0], [0], [1], [0, 0, 1, 1], [], []>} : vector<40x40xbf16>, vector<40x64xbf16>, vector<40x64xf32> -> vector<40x64xf32>
    %cst_41 = arith.constant dense<0.000000e+00> : vector<1x40xf32>
    %95 = tpu.matmul %64, %91, %cst_41 {dimension_numbers = #tpu.dot_dimension_numbers<[1], [1], [0], [0], [0, 0, 1, 0], [], []>} : vector<1x40xf32>, vector<40x40xf32>, vector<1x40xf32> -> vector<1x40xf32>
    %c0_42 = arith.constant 0 : index
    %c0_43 = arith.constant 0 : index
    %96 = vector.load %arg18[%c0_42, %c0_43] : memref<1x40xf32, #tpu.memory_space<vmem>>, vector<1x40xf32>
    %cst_44 = arith.constant dense<0.000000e+00> : vector<1x40xf32>
    %97 = tpu.matmul %96, %91, %cst_44 {dimension_numbers = #tpu.dot_dimension_numbers<[1], [1], [0], [0], [0, 0, 1, 0], [], []>} : vector<1x40xf32>, vector<40x40xf32>, vector<1x40xf32> -> vector<1x40xf32>
    %cst_45 = arith.constant 0.699999988 : f32
    %98 = vector.broadcast %cst_45 : f32 to vector<1x40xf32>
    %99 = arith.mulf %98, %95 : vector<1x40xf32>
    %cst_46 = arith.constant 7.500000e-03 : f32
    %100 = vector.broadcast %cst_46 : f32 to vector<1x40xf32>
    %101 = arith.addf %99, %100 : vector<1x40xf32>
    %102 = tpu.reciprocal %101 {approx = true} : vector<1x40xf32> -> vector<1x40xf32>
    %103 = arith.mulf %95, %102 : vector<1x40xf32>
    %cst_47 = arith.constant dense<0.000000e+00> : vector<1xf32>
    %104 = vector.multi_reduction <add>, %103, %cst_47 [1] : vector<1x40xf32> to vector<1xf32>
    %105 = vector.shape_cast %104 : vector<1xf32> to vector<1x1xf32>
    %106 = vector.broadcast %105 : vector<1x1xf32> to vector<1x40xf32>
    %107 = arith.divf %103, %106 : vector<1x40xf32>
    %108 = math.log %107 : vector<1x40xf32>
    %109 = arith.truncf %107 : vector<1x40xf32> to vector<1x40xbf16>
    %110 = arith.truncf %94 : vector<40x64xf32> to vector<40x64xbf16>
    %cst_48 = arith.constant dense<0.000000e+00> : vector<1x64xf32>
    %111 = tpu.matmul %109, %110, %cst_48 {dimension_numbers = #tpu.dot_dimension_numbers<[1], [0], [0], [1], [0, 0, 1, 1], [], []>} : vector<1x40xbf16>, vector<40x64xbf16>, vector<1x64xf32> -> vector<1x64xf32>
    %112 = arith.truncf %111 : vector<1x64xf32> to vector<1x64xbf16>
    %c0_49 = arith.constant 0 : index
    %c0_50 = arith.constant 0 : index
    %113 = vector.load %arg13[%c0_49, %c0_50] : memref<64x24xbf16, #tpu.memory_space<vmem>>, vector<64x24xbf16>
    %cst_51 = arith.constant dense<0.000000e+00> : vector<1x24xf32>
    %114 = tpu.matmul %112, %113, %cst_51 {dimension_numbers = #tpu.dot_dimension_numbers<[1], [0], [0], [1], [0, 0, 1, 1], [], []>} : vector<1x64xbf16>, vector<64x24xbf16>, vector<1x24xf32> -> vector<1x24xf32>
    %c0_52 = arith.constant 0 : index
    %c0_53 = arith.constant 0 : index
    %115 = vector.load %arg14[%c0_52, %c0_53] : memref<1x24xf32, #tpu.memory_space<vmem>>, vector<1x24xf32>
    %116 = arith.addf %114, %115 : vector<1x24xf32>
    %cst_54 = arith.constant 0.000000e+00 : f32
    %117 = vector.broadcast %cst_54 : f32 to vector<1x24xf32>
    %118 = arith.maximumf %116, %117 : vector<1x24xf32>
    %119 = arith.truncf %118 : vector<1x24xf32> to vector<1x24xbf16>
    %c0_55 = arith.constant 0 : index
    %c0_56 = arith.constant 0 : index
    %120 = vector.load %arg15[%c0_55, %c0_56] : memref<24x128xbf16, #tpu.memory_space<vmem>>, vector<24x128xbf16>
    %cst_57 = arith.constant dense<0.000000e+00> : vector<1x128xf32>
    %121 = tpu.matmul %119, %120, %cst_57 {dimension_numbers = #tpu.dot_dimension_numbers<[1], [0], [0], [1], [0, 0, 1, 1], [], []>} : vector<1x24xbf16>, vector<24x128xbf16>, vector<1x128xf32> -> vector<1x128xf32>
    %c0_58 = arith.constant 0 : index
    %c0_59 = arith.constant 0 : index
    %122 = vector.load %arg16[%c0_58, %c0_59] : memref<1x128xf32, #tpu.memory_space<vmem>>, vector<1x128xf32>
    %123 = arith.addf %121, %122 : vector<1x128xf32>
    %cst_60 = arith.constant 0.000000e+00 : f32
    %124 = vector.broadcast %cst_60 : f32 to vector<1x128xf32>
    %125 = arith.maximumf %123, %124 : vector<1x128xf32>
    %c0_61 = arith.constant 0 : index
    %c0_62 = arith.constant 0 : index
    %126 = vector.load %arg23[%c0_61, %c0_62] : memref<40x64xf32, #tpu.memory_space<vmem>>, vector<40x64xf32>
    tpu.vector_store %arg23[%c0_61, %c0_62], %94 {strides = array<i32>} : memref<40x64xf32, #tpu.memory_space<vmem>>, vector<40x64xf32>,
    %c0_63 = arith.constant 0 : index
    %c0_64 = arith.constant 0 : index
    %127 = vector.load %arg24[%c0_63, %c0_64] : memref<1x40xf32, #tpu.memory_space<vmem>>, vector<1x40xf32>
    tpu.vector_store %arg24[%c0_63, %c0_64], %108 {strides = array<i32>} : memref<1x40xf32, #tpu.memory_space<vmem>>, vector<1x40xf32>,
    %c0_65 = arith.constant 0 : index
    %c0_66 = arith.constant 0 : index
    %128 = vector.load %arg20[%c0_65, %c0_66] : memref<40x64xf32, #tpu.memory_space<vmem>>, vector<40x64xf32>
    tpu.vector_store %arg20[%c0_65, %c0_66], %94 {strides = array<i32>} : memref<40x64xf32, #tpu.memory_space<vmem>>, vector<40x64xf32>,
    %c0_67 = arith.constant 0 : index
    %c0_68 = arith.constant 0 : index
    %129 = vector.load %arg21[%c0_67, %c0_68] : memref<1x40xf32, #tpu.memory_space<vmem>>, vector<1x40xf32>
    tpu.vector_store %arg21[%c0_67, %c0_68], %108 {strides = array<i32>} : memref<1x40xf32, #tpu.memory_space<vmem>>, vector<1x40xf32>,
    %c0_69 = arith.constant 0 : index
    %c0_70 = arith.constant 0 : index
    %130 = vector.load %arg19[%c0_69, %c0_70] : memref<40x128xf32, #tpu.memory_space<vmem>>, vector<40x128xf32>
    %cst_71 = arith.constant dense<0.000000e+00> : vector<1x128xf32>
    %131 = tpu.matmul %97, %130, %cst_71 {dimension_numbers = #tpu.dot_dimension_numbers<[1], [0], [0], [1], [0, 0, 1, 1], [], []>} : vector<1x40xf32>, vector<40x128xf32>, vector<1x128xf32> -> vector<1x128xf32>
    %132 = arith.addf %131, %125 : vector<1x128xf32>
    %c0_72 = arith.constant 0 : index
    %c0_73 = arith.constant 0 : index
    %c0_74 = arith.constant 0 : index
    %133 = vector.load %arg22[%c0_72, %c0_73, %c0_74] : memref<1x1x128xf32, #tpu.memory_space<vmem>>, vector<1x1x128xf32>
    %134 = vector.shape_cast %133 : vector<1x1x128xf32> to vector<1x128xf32>
    %135 = vector.shape_cast %132 : vector<1x128xf32> to vector<1x1x128xf32>
    tpu.vector_store %arg22[%c0_72, %c0_73, %c0_74], %135 {strides = array<i32>} : memref<1x1x128xf32, #tpu.memory_space<vmem>>, vector<1x1x128xf32>,
    return
  }
  func.func @transform_0(%arg0: i32) -> (i32, i32) {
    %c0_i32 = arith.constant 0 : i32
    %c0_i32_0 = arith.constant 0 : i32
    %c0_i32_1 = arith.constant 0 : i32
    return %c0_i32, %c0_i32_0 : i32, i32
  }
  func.func @transform_1(%arg0: i32) -> (i32, i32) {
    %c0_i32 = arith.constant 0 : i32
    %c0_i32_0 = arith.constant 0 : i32
    %c0_i32_1 = arith.constant 0 : i32
    return %c0_i32, %c0_i32_0 : i32, i32
  }
  func.func @transform_2(%arg0: i32) -> (i32, i32) {
    %c0_i32 = arith.constant 0 : i32
    %c0_i32_0 = arith.constant 0 : i32
    %c0_i32_1 = arith.constant 0 : i32
    return %c0_i32, %c0_i32_0 : i32, i32
  }
  func.func @transform_3(%arg0: i32) -> (i32, i32, i32) {
    %c0_i32 = arith.constant 0 : i32
    %c0_i32_0 = arith.constant 0 : i32
    %c0_i32_1 = arith.constant 0 : i32
    return %arg0, %c0_i32, %c0_i32_0 : i32, i32, i32
  }
  func.func @transform_4(%arg0: i32) -> (i32, i32, i32) {
    %c0_i32 = arith.constant 0 : i32
    %c0_i32_0 = arith.constant 0 : i32
    %c0_i32_1 = arith.constant 0 : i32
    return %arg0, %c0_i32, %c0_i32_0 : i32, i32, i32
  }
  func.func @transform_5(%arg0: i32) -> (i32, i32) {
    %c0_i32 = arith.constant 0 : i32
    %c0_i32_0 = arith.constant 0 : i32
    %c0_i32_1 = arith.constant 0 : i32
    return %c0_i32, %c0_i32_0 : i32, i32
  }
  func.func @transform_6(%arg0: i32) -> (i32, i32) {
    %c0_i32 = arith.constant 0 : i32
    %c0_i32_0 = arith.constant 0 : i32
    %c0_i32_1 = arith.constant 0 : i32
    return %c0_i32, %c0_i32_0 : i32, i32
  }
  func.func @transform_7(%arg0: i32) -> (i32, i32) {
    %c0_i32 = arith.constant 0 : i32
    %c0_i32_0 = arith.constant 0 : i32
    %c0_i32_1 = arith.constant 0 : i32
    return %c0_i32, %c0_i32_0 : i32, i32
  }
  func.func @transform_8(%arg0: i32) -> (i32, i32) {
    %c0_i32 = arith.constant 0 : i32
    %c0_i32_0 = arith.constant 0 : i32
    %c0_i32_1 = arith.constant 0 : i32
    return %c0_i32, %c0_i32_0 : i32, i32
  }
  func.func @transform_9(%arg0: i32) -> (i32, i32) {
    %c0_i32 = arith.constant 0 : i32
    %c0_i32_0 = arith.constant 0 : i32
    %c0_i32_1 = arith.constant 0 : i32
    return %c0_i32, %c0_i32_0 : i32, i32
  }
  func.func @transform_10(%arg0: i32) -> (i32, i32) {
    %c0_i32 = arith.constant 0 : i32
    %c0_i32_0 = arith.constant 0 : i32
    %c0_i32_1 = arith.constant 0 : i32
    return %c0_i32, %c0_i32_0 : i32, i32
  }
  func.func @transform_11(%arg0: i32) -> (i32, i32) {
    %c0_i32 = arith.constant 0 : i32
    %c0_i32_0 = arith.constant 0 : i32
    %c0_i32_1 = arith.constant 0 : i32
    return %c0_i32, %c0_i32_0 : i32, i32
  }
  func.func @transform_12(%arg0: i32) -> (i32, i32) {
    %c0_i32 = arith.constant 0 : i32
    %c0_i32_0 = arith.constant 0 : i32
    %c0_i32_1 = arith.constant 0 : i32
    return %c0_i32, %c0_i32_0 : i32, i32
  }
  func.func @transform_13(%arg0: i32) -> (i32, i32) {
    %c0_i32 = arith.constant 0 : i32
    %c0_i32_0 = arith.constant 0 : i32
    %c0_i32_1 = arith.constant 0 : i32
    return %c0_i32, %c0_i32_0 : i32, i32
  }
  func.func @transform_14(%arg0: i32) -> (i32, i32) {
    %c0_i32 = arith.constant 0 : i32
    %c0_i32_0 = arith.constant 0 : i32
    %c0_i32_1 = arith.constant 0 : i32
    return %c0_i32, %c0_i32_0 : i32, i32
  }
  func.func @transform_15(%arg0: i32) -> (i32, i32) {
    %c0_i32 = arith.constant 0 : i32
    %c0_i32_0 = arith.constant 0 : i32
    %c0_i32_1 = arith.constant 0 : i32
    return %c0_i32, %c0_i32_0 : i32, i32
  }
  func.func @transform_16(%arg0: i32) -> (i32, i32) {
    %c0_i32 = arith.constant 0 : i32
    %c0_i32_0 = arith.constant 0 : i32
    %c0_i32_1 = arith.constant 0 : i32
    return %c0_i32, %c0_i32_0 : i32, i32
  }
  func.func @transform_17(%arg0: i32) -> (i32, i32) {
    %c0_i32 = arith.constant 0 : i32
    %c0_i32_0 = arith.constant 0 : i32
    %c0_i32_1 = arith.constant 0 : i32
    return %c0_i32, %c0_i32_0 : i32, i32
  }
  func.func @transform_18(%arg0: i32) -> (i32, i32) {
    %c0_i32 = arith.constant 0 : i32
    %c0_i32_0 = arith.constant 0 : i32
    %c0_i32_1 = arith.constant 0 : i32
    return %c0_i32, %c0_i32_0 : i32, i32
  }
  func.func @transform_19(%arg0: i32) -> (i32, i32) {
    %c0_i32 = arith.constant 0 : i32
    %c0_i32_0 = arith.constant 0 : i32
    %c0_i32_1 = arith.constant 0 : i32
    return %c0_i32, %c0_i32_0 : i32, i32
  }
  func.func @transform_20(%arg0: i32) -> (i32, i32) {
    %c0_i32 = arith.constant 0 : i32
    %c0_i32_0 = arith.constant 0 : i32
    %c0_i32_1 = arith.constant 0 : i32
    return %c0_i32, %c0_i32_0 : i32, i32
  }
  func.func @transform_21(%arg0: i32) -> (i32, i32, i32) {
    %c0_i32 = arith.constant 0 : i32
    %c0_i32_0 = arith.constant 0 : i32
    %c0_i32_1 = arith.constant 0 : i32
    return %arg0, %c0_i32, %c0_i32_0 : i32, i32, i32
  }
}

</mosaic_0001>

<llo_original>
// kernel: tpu_custom_call.1
$region0: #{tpu_custom_call.1}
  #allocation0 [shape = 'u32[]', space=smem, size = 0x4, offset = 0x4, fixed_abs, tag = 'smem constant byte address 0x4 - core index']
  #allocation1 [shape = 'u32[144,128]{1,0:T(1,128)}', space=vmem, size = 0x12000, scoped, tag = 'internal scratch']
  #allocation2 [shape = 'f32[40,64]{1,0:T(8,128)}', space=vmem, size = 0x5000, scoped, tag = 'scratch operand']
  #allocation3 [shape = 'f32[1,40]{1,0:T(1,128)}', space=vmem, size = 0x200, scoped, tag = 'scratch operand']
  #allocation4 [shape = 'f32[8,128]{1,0:T(8,128)}', space=vmem, size = 0x1000, scoped, tag = 'scratch operand']
  #allocation5 [shape = 'f32[8,128]{1,0:T(8,128)}', space=vmem, size = 0x1000, scoped, tag = 'scratch operand']
  %s0 = inlined_call_operand.hbm [shape: f32[8,8], index: 0, kind: input, shape index: {}]
  %s1 = inlined_call_operand.vmem [shape: f32[40,64], index: 1, kind: input, shape index: {}]
  %s2 = inlined_call_operand.hbm [shape: f32[1,40], index: 2, kind: input, shape index: {}]
  %s3 = inlined_call_operand.vmem [shape: f32[8,40,64], index: 3, kind: input, shape index: {}]
  %s4 = inlined_call_operand.vmem [shape: f32[8,40,1], index: 4, kind: input, shape index: {}]
  %s5 = inlined_call_operand.hbm [shape: bf16[64,128], index: 5, kind: input, shape index: {}]
  %s6 = inlined_call_operand.hbm [shape: f32[8,128], index: 6, kind: input, shape index: {}]
  %s7 = inlined_call_operand.hbm [shape: f32[1,128], index: 7, kind: input, shape index: {}]
  %s8 = inlined_call_operand.hbm [shape: bf16[64,128], index: 8, kind: input, shape index: {}]
  %s9 = inlined_call_operand.hbm [shape: f32[8,128], index: 9, kind: input, shape index: {}]
  %s10 = inlined_call_operand.hbm [shape: f32[1,128], index: 10, kind: input, shape index: {}]
  %s11 = inlined_call_operand.hbm [shape: bf16[1,64], index: 11, kind: input, shape index: {}]
  %s12 = inlined_call_operand.vmem [shape: bf16[64,24], index: 12, kind: input, shape index: {}]
  %s13 = inlined_call_operand.hbm [shape: f32[1,24], index: 13, kind: input, shape index: {}]
  %s14 = inlined_call_operand.hbm [shape: bf16[24,128], index: 14, kind: input, shape index: {}]
  %s15 = inlined_call_operand.hbm [shape: f32[1,128], index: 15, kind: input, shape index: {}]
  %s16 = inlined_call_operand.vmem [shape: f32[40,40], index: 16, kind: input, shape index: {}]
  %s17 = inlined_call_operand.hbm [shape: f32[1,40], index: 17, kind: input, shape index: {}]
  %s18 = inlined_call_operand.vmem [shape: f32[40,128], index: 18, kind: input, shape index: {}]
  %s19 = inlined_call_operand.hbm [shape: f32[40,64], index: 19, kind: output, shape index: {0}]
  %s20 = inlined_call_operand.hbm [shape: f32[1,40], index: 20, kind: output, shape index: {1}]
  %s21 = inlined_call_operand.hbm [shape: f32[8,1,128], index: 21, kind: output, shape index: {2}]
  %22 = xla_tuple %s19, %s20, %s21
  %s23 = sld [smem:[#allocation0]]
  $region181: #{tpu_custom_call.1} parent=0
    _
  %s25 = ssub.s32 1, %s23
  %s26 = scalar_select 0, %s25, %s23
  $region1: #{tpu_custom_call.1} parent=0
    #allocation6 [shape = 'u8[4096]{0}', space=vmem, size = 0x1000, scoped, tag = 'input window, operand 0, single buffered']
    #allocation7 [shape = 's32[2]{0}', space=sflag, size = 0x8, scoped, tag = 'scoped memory for tpu_custom_call.1']
    #allocation8 [shape = 's32[2]{0}', space=sflag, size = 0x8, scoped, tag = 'scoped memory for tpu_custom_call.1']
    #allocation9 [shape = 'u8[512]{0}', space=vmem, size = 0x400, scoped, tag = 'input window, operand 2, single buffered']
    #allocation10 [shape = 's32[1]{0}', space=sflag, size = 0x4, scoped, tag = 'scoped memory for tpu_custom_call.1']
    #allocation11 [shape = 'u8[16384]{0}', space=vmem, size = 0x4000, scoped, tag = 'input window, operand 5, single buffered']
    #allocation12 [shape = 'u8[4096]{0}', space=vmem, size = 0x1000, scoped, tag = 'input window, operand 6, single buffered']
    #allocation13 [shape = 's32[1]{0}', space=sflag, size = 0x4, scoped, tag = 'scoped memory for tpu_custom_call.1']
    #allocation14 [shape = 'u8[512]{0}', space=vmem, size = 0x400, scoped, tag = 'input window, operand 7, single buffered']
    #allocation15 [shape = 'u8[16384]{0}', space=vmem, size = 0x4000, scoped, tag = 'input window, operand 8, single buffered']
    #allocation16 [shape = 's32[1]{0}', space=sflag, size = 0x4, scoped, tag = 'scoped memory for tpu_custom_call.1']
    #allocation17 [shape = 'u8[4096]{0}', space=vmem, size = 0x1000, scoped, tag = 'input window, operand 9, single buffered']
    #allocation18 [shape = 'u8[512]{0}', space=vmem, size = 0x400, scoped, tag = 'input window, operand 10, single buffered']
    #allocation19 [shape = 's32[1]{0}', space=sflag, size = 0x4, scoped, tag = 'scoped memory for tpu_custom_call.1']
    #allocation20 [shape = 'u8[512]{0}', space=vmem, size = 0x400, scoped, tag = 'input window, operand 11, single buffered']
    #allocation21 [shape = 'u8[512]{0}', space=vmem, size = 0x400, scoped, tag = 'input window, operand 13, single buffered']
    #allocation22 [shape = 's32[1]{0}', space=sflag, size = 0x4, scoped, tag = 'scoped memory for tpu_custom_call.1']
    #allocation23 [shape = 'u8[6144]{0}', space=vmem, size = 0x1800, scoped, tag = 'input window, operand 14, single buffered']
    #allocation24 [shape = 'u8[512]{0}', space=vmem, size = 0x400, scoped, tag = 'input window, operand 15, single buffered']
    #allocation25 [shape = 's32[1]{0}', space=sflag, size = 0x4, scoped, tag = 'scoped memory for tpu_custom_call.1']
    #allocation26 [shape = 'u8[512]{0}', space=vmem, size = 0x400, scoped, tag = 'input window, operand 17, single buffered']
    #allocation27 [shape = 'u8[20480]{0}', space=vmem, size = 0x5000, scoped, tag = 'output window, operand 0, single buffered']
    #allocation28 [shape = 'u8[512]{0}', space=vmem, size = 0x400, scoped, tag = 'output window, operand 1, single buffered']
    #allocation29 [shape = 's32[1]{0}', space=sflag, size = 0x4, scoped, tag = 'scoped memory for tpu_custom_call.1']
    #allocation30 [shape = 'u8[1024]{0}', space=vmem, size = 0x400, scoped, tag = 'output window, operand 2']
    %27 = vsyncpa [#allocation7], 0
    %28 = vsyncpa [#allocation10], 0
    %29 = vsyncpa [#allocation13], 0
    %30 = vsyncpa [#allocation16], 0
    %31 = vsyncpa [#allocation19], 0
    %32 = vsyncpa [#allocation22], 0
    %33 = vsyncpa [#allocation25], 0
    %34 = vsyncpa [#allocation8], 0
    %35 = vsyncpa [#allocation29], 0
    loop: start=0, step=1, limit=10
    $region2: #{tpu_custom_call.1} parent=1 // loop_pre_header
      _
    $region3: #{tpu_custom_call.1} parent=1 // loop_header
      %s37 = sphi 0, %s41
      %p38 = scmp.ge.s32.totalorder %s37, 10
      %s45 = sphi 0, %s45
      %s47 = sphi 0, %s45
      %s48 = sphi 0, %s47
      %s62 = sphi 0, %s48
      %s66 = sphi 0, %s66
      %s68 = sphi 0, %s66
      %s69 = sphi 0, %s68
      %s83 = sphi 0, %s69
      %s87 = sphi 0, %s87
      %s89 = sphi 0, %s87
      %s90 = sphi 0, %s89
      %s104 = sphi 0, %s90
      %s110 = sphi 0, %s112
      %s113 = sphi 0, %s110
      %s114 = sphi 0, %s113
      %s130 = sphi 0, %s114
      %s136 = sphi 0, %s138
      %s139 = sphi 0, %s136
      %s140 = sphi 0, %s139
      %s156 = sphi 0, %s140
      %s160 = sphi 0, %s160
      %s162 = sphi 0, %s160
      %s163 = sphi 0, %s162
      %s177 = sphi 0, %s163
      %s181 = sphi 0, %s181
      %s183 = sphi 0, %s181
      %s184 = sphi 0, %s183
      %s198 = sphi 0, %s184
      %s202 = sphi 0, %s202
      %s204 = sphi 0, %s202
      %s205 = sphi 0, %s204
      %s219 = sphi 0, %s205
      %s223 = sphi 0, %s223
      %s225 = sphi 0, %s223
      %s226 = sphi 0, %s225
      %s240 = sphi 0, %s226
      %s244 = sphi 0, %s244
      %s246 = sphi 0, %s244
      %s247 = sphi 0, %s246
      %s261 = sphi 0, %s247
      %s265 = sphi 0, %s265
      %s267 = sphi 0, %s265
      %s268 = sphi 0, %s267
      %s282 = sphi 0, %s268
      %s286 = sphi 0, %s286
      %s288 = sphi 0, %s286
      %s289 = sphi 0, %s288
      %s303 = sphi 0, %s289
      %s307 = sphi 0, %s307
      %s309 = sphi 0, %s307
      %s310 = sphi 0, %s309
      %s324 = sphi 0, %s310
      %s328 = sphi 0, %s328
      %s330 = sphi 0, %s328
      %s331 = sphi 0, %s330
      %s345 = sphi 0, %s331
      %s349 = sphi 0, %s349
      %s351 = sphi 0, %s349
      %s352 = sphi 0, %s351
      %s366 = sphi 0, %s352
      %s370 = sphi 0, %s370
      %s372 = sphi 0, %s370
      %s373 = sphi 0, %s372
      %s387 = sphi 0, %s373
      %s391 = sphi 0, %s391
      %s393 = sphi 0, %s391
      %s394 = sphi 0, %s393
      %s408 = sphi 0, %s394
      %s412 = sphi 0, %s412
      %s414 = sphi 0, %s412
      %s415 = sphi 0, %s414
      %s429 = sphi 0, %s415
      %s433 = sphi 0, %s433
      %s435 = sphi 0, %s433
      %s436 = sphi 0, %s435
      %s450 = sphi 0, %s436
      %s454 = sphi 0, %s454
      %s456 = sphi 0, %s454
      %s457 = sphi 0, %s456
      %s471 = sphi 0, %s457
      %s475 = sphi 0, %s475
      %s477 = sphi 0, %s475
      %s478 = sphi 0, %s477
      %s492 = sphi 0, %s478
      %s498 = sphi 0, %s500
      %s501 = sphi 0, %s498
      %s502 = sphi 0, %s501
      %s518 = sphi 0, %s502
    $region4: #{tpu_custom_call.1} parent=1 // loop_header_branch
      %40 = sbr.rel (%p38) target = $region8
    $region5: #{tpu_custom_call.1} parent=1 // loop_body
      %s42 = ssub.s32 %s37, 1
      %s43 = ssub.s32 %s37, 2
      %s44 = sadd.s32 %s37, 1
      %s46 = sadd.s32 %s45, 1
      %p49 = scmp.eq.s32.totalorder %s37, 7
      %p50 = scmp.ne.s32.totalorder %s45, %s47
      %p51 = scmp.eq.s32.totalorder %s37, 0
      %p52 = por %p50, %p51
      %p53 = scmp.ne.s32.totalorder %s45, %s47
      %p54 = scmp.eq.s32.totalorder %s42, 7
      %p55 = por %p53, %p54
      %p56 = scmp.ne.s32.totalorder %s47, %s48
      %p57 = scmp.eq.s32.totalorder %s42, 0
      %p58 = por %p56, %p57
      %p59 = scmp.ne.s32.totalorder %s47, %s48
      %p60 = scmp.eq.s32.totalorder %s43, 7
      %p61 = por %p59, %p60
      %p63 = scmp.ne.s32.totalorder %s48, %s62
      %p64 = scmp.eq.s32.totalorder %s43, 0
      %p65 = por %p63, %p64
      %s67 = sadd.s32 %s66, 1
      %p70 = scmp.eq.s32.totalorder %s37, 7
      %p71 = scmp.ne.s32.totalorder %s66, %s68
      %p72 = scmp.eq.s32.totalorder %s37, 0
      %p73 = por %p71, %p72
      %p74 = scmp.ne.s32.totalorder %s66, %s68
      %p75 = scmp.eq.s32.totalorder %s42, 7
      %p76 = por %p74, %p75
      %p77 = scmp.ne.s32.totalorder %s68, %s69
      %p78 = scmp.eq.s32.totalorder %s42, 0
      %p79 = por %p77, %p78
      %p80 = scmp.ne.s32.totalorder %s68, %s69
      %p81 = scmp.eq.s32.totalorder %s43, 7
      %p82 = por %p80, %p81
      %p84 = scmp.ne.s32.totalorder %s69, %s83
      %p85 = scmp.eq.s32.totalorder %s43, 0
      %p86 = por %p84, %p85
      %s88 = sadd.s32 %s87, 1
      %p91 = scmp.eq.s32.totalorder %s37, 7
      %p92 = scmp.ne.s32.totalorder %s87, %s89
      %p93 = scmp.eq.s32.totalorder %s37, 0
      %p94 = por %p92, %p93
      %p95 = scmp.ne.s32.totalorder %s87, %s89
      %p96 = scmp.eq.s32.totalorder %s42, 7
      %p97 = por %p95, %p96
      %p98 = scmp.ne.s32.totalorder %s89, %s90
      %p99 = scmp.eq.s32.totalorder %s42, 0
      %p100 = por %p98, %p99
      %p101 = scmp.ne.s32.totalorder %s89, %s90
      %p102 = scmp.eq.s32.totalorder %s43, 7
      %p103 = por %p101, %p102
      %p105 = scmp.ne.s32.totalorder %s90, %s104
      %p106 = scmp.eq.s32.totalorder %s43, 0
      %p107 = por %p105, %p106
      %s108 = ssub.s32 %s37, %s44
      %p109 = scmp.eq.s32.totalorder %s108, 0
      %s111 = sadd.s32 %s110, 1
      %s112 = scalar_select %p109, %s110, %s111
      %p115 = pneg %p109
      %p116 = scmp.eq.s32.totalorder %s37, 7
      %p117 = por %p115, %p116
      %p118 = scmp.ne.s32.totalorder %s110, %s113
      %p119 = scmp.eq.s32.totalorder %s37, 0
      %p120 = por %p118, %p119
      %p121 = scmp.ne.s32.totalorder %s110, %s113
      %p122 = scmp.eq.s32.totalorder %s42, 7
      %p123 = por %p121, %p122
      %p124 = scmp.ne.s32.totalorder %s113, %s114
      %p125 = scmp.eq.s32.totalorder %s42, 0
      %p126 = por %p124, %p125
      %p127 = scmp.ne.s32.totalorder %s113, %s114
      %p128 = scmp.eq.s32.totalorder %s43, 7
      %p129 = por %p127, %p128
      %p131 = scmp.ne.s32.totalorder %s114, %s130
      %p132 = scmp.eq.s32.totalorder %s43, 0
      %p133 = por %p131, %p132
      %s134 = ssub.s32 %s37, %s44
      %p135 = scmp.eq.s32.totalorder %s134, 0
      %s137 = sadd.s32 %s136, 1
      %s138 = scalar_select %p135, %s136, %s137
      %p141 = pneg %p135
      %p142 = scmp.eq.s32.totalorder %s37, 7
      %p143 = por %p141, %p142
      %p144 = scmp.ne.s32.totalorder %s136, %s139
      %p145 = scmp.eq.s32.totalorder %s37, 0
      %p146 = por %p144, %p145
      %p147 = scmp.ne.s32.totalorder %s136, %s139
      %p148 = scmp.eq.s32.totalorder %s42, 7
      %p149 = por %p147, %p148
      %p150 = scmp.ne.s32.totalorder %s139, %s140
      %p151 = scmp.eq.s32.totalorder %s42, 0
      %p152 = por %p150, %p151
      %p153 = scmp.ne.s32.totalorder %s139, %s140
      %p154 = scmp.eq.s32.totalorder %s43, 7
      %p155 = por %p153, %p154
      %p157 = scmp.ne.s32.totalorder %s140, %s156
      %p158 = scmp.eq.s32.totalorder %s43, 0
      %p159 = por %p157, %p158
      %s161 = sadd.s32 %s160, 1
      %p164 = scmp.eq.s32.totalorder %s37, 7
      %p165 = scmp.ne.s32.totalorder %s160, %s162
      %p166 = scmp.eq.s32.totalorder %s37, 0
      %p167 = por %p165, %p166
      %p168 = scmp.ne.s32.totalorder %s160, %s162
      %p169 = scmp.eq.s32.totalorder %s42, 7
      %p170 = por %p168, %p169
      %p171 = scmp.ne.s32.totalorder %s162, %s163
      %p172 = scmp.eq.s32.totalorder %s42, 0
      %p173 = por %p171, %p172
      %p174 = scmp.ne.s32.totalorder %s162, %s163
      %p175 = scmp.eq.s32.totalorder %s43, 7
      %p176 = por %p174, %p175
      %p178 = scmp.ne.s32.totalorder %s163, %s177
      %p179 = scmp.eq.s32.totalorder %s43, 0
      %p180 = por %p178, %p179
      %s182 = sadd.s32 %s181, 1
      %p185 = scmp.eq.s32.totalorder %s37, 7
      %p186 = scmp.ne.s32.totalorder %s181, %s183
      %p187 = scmp.eq.s32.totalorder %s37, 0
      %p188 = por %p186, %p187
      %p189 = scmp.ne.s32.totalorder %s181, %s183
      %p190 = scmp.eq.s32.totalorder %s42, 7
      %p191 = por %p189, %p190
      %p192 = scmp.ne.s32.totalorder %s183, %s184
      %p193 = scmp.eq.s32.totalorder %s42, 0
      %p194 = por %p192, %p193
      %p195 = scmp.ne.s32.totalorder %s183, %s184
      %p196 = scmp.eq.s32.totalorder %s43, 7
      %p197 = por %p195, %p196
      %p199 = scmp.ne.s32.totalorder %s184, %s198
      %p200 = scmp.eq.s32.totalorder %s43, 0
      %p201 = por %p199, %p200
      %s203 = sadd.s32 %s202, 1
      %p206 = scmp.eq.s32.totalorder %s37, 7
      %p207 = scmp.ne.s32.totalorder %s202, %s204
      %p208 = scmp.eq.s32.totalorder %s37, 0
      %p209 = por %p207, %p208
      %p210 = scmp.ne.s32.totalorder %s202, %s204
      %p211 = scmp.eq.s32.totalorder %s42, 7
      %p212 = por %p210, %p211
      %p213 = scmp.ne.s32.totalorder %s204, %s205
      %p214 = scmp.eq.s32.totalorder %s42, 0
      %p215 = por %p213, %p214
      %p216 = scmp.ne.s32.totalorder %s204, %s205
      %p217 = scmp.eq.s32.totalorder %s43, 7
      %p218 = por %p216, %p217
      %p220 = scmp.ne.s32.totalorder %s205, %s219
      %p221 = scmp.eq.s32.totalorder %s43, 0
      %p222 = por %p220, %p221
      %s224 = sadd.s32 %s223, 1
      %p227 = scmp.eq.s32.totalorder %s37, 7
      %p228 = scmp.ne.s32.totalorder %s223, %s225
      %p229 = scmp.eq.s32.totalorder %s37, 0
      %p230 = por %p228, %p229
      %p231 = scmp.ne.s32.totalorder %s223, %s225
      %p232 = scmp.eq.s32.totalorder %s42, 7
      %p233 = por %p231, %p232
      %p234 = scmp.ne.s32.totalorder %s225, %s226
      %p235 = scmp.eq.s32.totalorder %s42, 0
      %p236 = por %p234, %p235
      %p237 = scmp.ne.s32.totalorder %s225, %s226
      %p238 = scmp.eq.s32.totalorder %s43, 7
      %p239 = por %p237, %p238
      %p241 = scmp.ne.s32.totalorder %s226, %s240
      %p242 = scmp.eq.s32.totalorder %s43, 0
      %p243 = por %p241, %p242
      %s245 = sadd.s32 %s244, 1
      %p248 = scmp.eq.s32.totalorder %s37, 7
      %p249 = scmp.ne.s32.totalorder %s244, %s246
      %p250 = scmp.eq.s32.totalorder %s37, 0
      %p251 = por %p249, %p250
      %p252 = scmp.ne.s32.totalorder %s244, %s246
      %p253 = scmp.eq.s32.totalorder %s42, 7
      %p254 = por %p252, %p253
      %p255 = scmp.ne.s32.totalorder %s246, %s247
      %p256 = scmp.eq.s32.totalorder %s42, 0
      %p257 = por %p255, %p256
      %p258 = scmp.ne.s32.totalorder %s246, %s247
      %p259 = scmp.eq.s32.totalorder %s43, 7
      %p260 = por %p258, %p259
      %p262 = scmp.ne.s32.totalorder %s247, %s261
      %p263 = scmp.eq.s32.totalorder %s43, 0
      %p264 = por %p262, %p263
      %s266 = sadd.s32 %s265, 1
      %p269 = scmp.eq.s32.totalorder %s37, 7
      %p270 = scmp.ne.s32.totalorder %s265, %s267
      %p271 = scmp.eq.s32.totalorder %s37, 0
      %p272 = por %p270, %p271
      %p273 = scmp.ne.s32.totalorder %s265, %s267
      %p274 = scmp.eq.s32.totalorder %s42, 7
      %p275 = por %p273, %p274
      %p276 = scmp.ne.s32.totalorder %s267, %s268
      %p277 = scmp.eq.s32.totalorder %s42, 0
      %p278 = por %p276, %p277
      %p279 = scmp.ne.s32.totalorder %s267, %s268
      %p280 = scmp.eq.s32.totalorder %s43, 7
      %p281 = por %p279, %p280
      %p283 = scmp.ne.s32.totalorder %s268, %s282
      %p284 = scmp.eq.s32.totalorder %s43, 0
      %p285 = por %p283, %p284
      %s287 = sadd.s32 %s286, 1
      %p290 = scmp.eq.s32.totalorder %s37, 7
      %p291 = scmp.ne.s32.totalorder %s286, %s288
      %p292 = scmp.eq.s32.totalorder %s37, 0
      %p293 = por %p291, %p292
      %p294 = scmp.ne.s32.totalorder %s286, %s288
      %p295 = scmp.eq.s32.totalorder %s42, 7
      %p296 = por %p294, %p295
      %p297 = scmp.ne.s32.totalorder %s288, %s289
      %p298 = scmp.eq.s32.totalorder %s42, 0
      %p299 = por %p297, %p298
      %p300 = scmp.ne.s32.totalorder %s288, %s289
      %p301 = scmp.eq.s32.totalorder %s43, 7
      %p302 = por %p300, %p301
      %p304 = scmp.ne.s32.totalorder %s289, %s303
      %p305 = scmp.eq.s32.totalorder %s43, 0
      %p306 = por %p304, %p305
      %s308 = sadd.s32 %s307, 1
      %p311 = scmp.eq.s32.totalorder %s37, 7
      %p312 = scmp.ne.s32.totalorder %s307, %s309
      %p313 = scmp.eq.s32.totalorder %s37, 0
      %p314 = por %p312, %p313
      %p315 = scmp.ne.s32.totalorder %s307, %s309
      %p316 = scmp.eq.s32.totalorder %s42, 7
      %p317 = por %p315, %p316
      %p318 = scmp.ne.s32.totalorder %s309, %s310
      %p319 = scmp.eq.s32.totalorder %s42, 0
      %p320 = por %p318, %p319
      %p321 = scmp.ne.s32.totalorder %s309, %s310
      %p322 = scmp.eq.s32.totalorder %s43, 7
      %p323 = por %p321, %p322
      %p325 = scmp.ne.s32.totalorder %s310, %s324
      %p326 = scmp.eq.s32.totalorder %s43, 0
      %p327 = por %p325, %p326
      %s329 = sadd.s32 %s328, 1
      %p332 = scmp.eq.s32.totalorder %s37, 7
      %p333 = scmp.ne.s32.totalorder %s328, %s330
      %p334 = scmp.eq.s32.totalorder %s37, 0
      %p335 = por %p333, %p334
      %p336 = scmp.ne.s32.totalorder %s328, %s330
      %p337 = scmp.eq.s32.totalorder %s42, 7
      %p338 = por %p336, %p337
      %p339 = scmp.ne.s32.totalorder %s330, %s331
      %p340 = scmp.eq.s32.totalorder %s42, 0
      %p341 = por %p339, %p340
      %p342 = scmp.ne.s32.totalorder %s330, %s331
      %p343 = scmp.eq.s32.totalorder %s43, 7
      %p344 = por %p342, %p343
      %p346 = scmp.ne.s32.totalorder %s331, %s345
      %p347 = scmp.eq.s32.totalorder %s43, 0
      %p348 = por %p346, %p347
      %s350 = sadd.s32 %s349, 1
      %p353 = scmp.eq.s32.totalorder %s37, 7
      %p354 = scmp.ne.s32.totalorder %s349, %s351
      %p355 = scmp.eq.s32.totalorder %s37, 0
      %p356 = por %p354, %p355
      %p357 = scmp.ne.s32.totalorder %s349, %s351
      %p358 = scmp.eq.s32.totalorder %s42, 7
      %p359 = por %p357, %p358
      %p360 = scmp.ne.s32.totalorder %s351, %s352
      %p361 = scmp.eq.s32.totalorder %s42, 0
      %p362 = por %p360, %p361
      %p363 = scmp.ne.s32.totalorder %s351, %s352
      %p364 = scmp.eq.s32.totalorder %s43, 7
      %p365 = por %p363, %p364
      %p367 = scmp.ne.s32.totalorder %s352, %s366
      %p368 = scmp.eq.s32.totalorder %s43, 0
      %p369 = por %p367, %p368
      %s371 = sadd.s32 %s370, 1
      %p374 = scmp.eq.s32.totalorder %s37, 7
      %p375 = scmp.ne.s32.totalorder %s370, %s372
      %p376 = scmp.eq.s32.totalorder %s37, 0
      %p377 = por %p375, %p376
      %p378 = scmp.ne.s32.totalorder %s370, %s372
      %p379 = scmp.eq.s32.totalorder %s42, 7
      %p380 = por %p378, %p379
      %p381 = scmp.ne.s32.totalorder %s372, %s373
      %p382 = scmp.eq.s32.totalorder %s42, 0
      %p383 = por %p381, %p382
      %p384 = scmp.ne.s32.totalorder %s372, %s373
      %p385 = scmp.eq.s32.totalorder %s43, 7
      %p386 = por %p384, %p385
      %p388 = scmp.ne.s32.totalorder %s373, %s387
      %p389 = scmp.eq.s32.totalorder %s43, 0
      %p390 = por %p388, %p389
      %s392 = sadd.s32 %s391, 1
      %p395 = scmp.eq.s32.totalorder %s37, 7
      %p396 = scmp.ne.s32.totalorder %s391, %s393
      %p397 = scmp.eq.s32.totalorder %s37, 0
      %p398 = por %p396, %p397
      %p399 = scmp.ne.s32.totalorder %s391, %s393
      %p400 = scmp.eq.s32.totalorder %s42, 7
      %p401 = por %p399, %p400
      %p402 = scmp.ne.s32.totalorder %s393, %s394
      %p403 = scmp.eq.s32.totalorder %s42, 0
      %p404 = por %p402, %p403
      %p405 = scmp.ne.s32.totalorder %s393, %s394
      %p406 = scmp.eq.s32.totalorder %s43, 7
      %p407 = por %p405, %p406
      %p409 = scmp.ne.s32.totalorder %s394, %s408
      %p410 = scmp.eq.s32.totalorder %s43, 0
      %p411 = por %p409, %p410
      %s413 = sadd.s32 %s412, 1
      %p416 = scmp.eq.s32.totalorder %s37, 7
      %p417 = scmp.ne.s32.totalorder %s412, %s414
      %p418 = scmp.eq.s32.totalorder %s37, 0
      %p419 = por %p417, %p418
      %p420 = scmp.ne.s32.totalorder %s412, %s414
      %p421 = scmp.eq.s32.totalorder %s42, 7
      %p422 = por %p420, %p421
      %p423 = scmp.ne.s32.totalorder %s414, %s415
      %p424 = scmp.eq.s32.totalorder %s42, 0
      %p425 = por %p423, %p424
      %p426 = scmp.ne.s32.totalorder %s414, %s415
      %p427 = scmp.eq.s32.totalorder %s43, 7
      %p428 = por %p426, %p427
      %p430 = scmp.ne.s32.totalorder %s415, %s429
      %p431 = scmp.eq.s32.totalorder %s43, 0
      %p432 = por %p430, %p431
      %s434 = sadd.s32 %s433, 1
      %p437 = scmp.eq.s32.totalorder %s37, 7
      %p438 = scmp.ne.s32.totalorder %s433, %s435
      %p439 = scmp.eq.s32.totalorder %s37, 0
      %p440 = por %p438, %p439
      %p441 = scmp.ne.s32.totalorder %s433, %s435
      %p442 = scmp.eq.s32.totalorder %s42, 7
      %p443 = por %p441, %p442
      %p444 = scmp.ne.s32.totalorder %s435, %s436
      %p445 = scmp.eq.s32.totalorder %s42, 0
      %p446 = por %p444, %p445
      %p447 = scmp.ne.s32.totalorder %s435, %s436
      %p448 = scmp.eq.s32.totalorder %s43, 7
      %p449 = por %p447, %p448
      %p451 = scmp.ne.s32.totalorder %s436, %s450
      %p452 = scmp.eq.s32.totalorder %s43, 0
      %p453 = por %p451, %p452
      %s455 = sadd.s32 %s454, 1
      %p458 = scmp.eq.s32.totalorder %s37, 7
      %p459 = scmp.ne.s32.totalorder %s454, %s456
      %p460 = scmp.eq.s32.totalorder %s37, 0
      %p461 = por %p459, %p460
      %p462 = scmp.ne.s32.totalorder %s454, %s456
      %p463 = scmp.eq.s32.totalorder %s42, 7
      %p464 = por %p462, %p463
      %p465 = scmp.ne.s32.totalorder %s456, %s457
      %p466 = scmp.eq.s32.totalorder %s42, 0
      %p467 = por %p465, %p466
      %p468 = scmp.ne.s32.totalorder %s456, %s457
      %p469 = scmp.eq.s32.totalorder %s43, 7
      %p470 = por %p468, %p469
      %p472 = scmp.ne.s32.totalorder %s457, %s471
      %p473 = scmp.eq.s32.totalorder %s43, 0
      %p474 = por %p472, %p473
      %s476 = sadd.s32 %s475, 1
      %p479 = scmp.eq.s32.totalorder %s37, 7
      %p480 = scmp.ne.s32.totalorder %s475, %s477
      %p481 = scmp.eq.s32.totalorder %s37, 0
      %p482 = por %p480, %p481
      %p483 = scmp.ne.s32.totalorder %s475, %s477
      %p484 = scmp.eq.s32.totalorder %s42, 7
      %p485 = por %p483, %p484
      %p486 = scmp.ne.s32.totalorder %s477, %s478
      %p487 = scmp.eq.s32.totalorder %s42, 0
      %p488 = por %p486, %p487
      %p489 = scmp.ne.s32.totalorder %s477, %s478
      %p490 = scmp.eq.s32.totalorder %s43, 7
      %p491 = por %p489, %p490
      %p493 = scmp.ne.s32.totalorder %s478, %s492
      %p494 = scmp.eq.s32.totalorder %s43, 0
      %p495 = por %p493, %p494
      %s496 = ssub.s32 %s37, %s44
      %p497 = scmp.eq.s32.totalorder %s496, 0
      %s499 = sadd.s32 %s498, 1
      %s500 = scalar_select %p497, %s498, %s499
      %p503 = pneg %p497
      %p504 = scmp.eq.s32.totalorder %s37, 7
      %p505 = por %p503, %p504
      %p506 = scmp.ne.s32.totalorder %s498, %s501
      %p507 = scmp.eq.s32.totalorder %s37, 0
      %p508 = por %p506, %p507
      %p509 = scmp.ne.s32.totalorder %s498, %s501
      %p510 = scmp.eq.s32.totalorder %s42, 7
      %p511 = por %p509, %p510
      %p512 = scmp.ne.s32.totalorder %s501, %s502
      %p513 = scmp.eq.s32.totalorder %s42, 0
      %p514 = por %p512, %p513
      %p515 = scmp.ne.s32.totalorder %s501, %s502
      %p516 = scmp.eq.s32.totalorder %s43, 7
      %p517 = por %p515, %p516
      %p519 = scmp.ne.s32.totalorder %s502, %s518
      %p520 = scmp.eq.s32.totalorder %s43, 0
      %p521 = por %p519, %p520
      %p522 = scmp.le.s32.totalorder 1, %s37
      %p523 = scmp.lt.s32.totalorder %s37, 9
      %p524 = pnand %p522, %p523
      %p525 = pneg %p524
      // Predicated region
      $region9: #{tpu_custom_call.1} parent=5 // pred_check
        _
      $region10: #{tpu_custom_call.1} parent=5 // pred_check_branch
        %527 = sbr.rel (%p524) target = $region12
      $region11: #{tpu_custom_call.1} parent=5 // pred_region
        %s528 = ssub.s32 %s37, 1
        // Predicated region
        $region13: #{tpu_custom_call.1} parent=11 // pred_check
          %p529 = pneg %p58
        $region14: #{tpu_custom_call.1} parent=11 // pred_check_branch
          %531 = sbr.rel (%p529) target = $region16
        $region15: #{tpu_custom_call.1} parent=11 // pred_region
          %s533 = ssub.s32 128, 128
          %534 = vsyncadd [#allocation7], %s533
          %s536 = sshll.u32 [#allocation6], 4
          %s537 = int_to_ptr.vmem [resolvable:$true] %s536
          %539 = dma.hbm_to_vmem [thread:$0]  %s0, 128, %s537, [#allocation7]
        $region16: #{tpu_custom_call.1} parent=11 // pred_fallthru
          _
        // Predicated region
        $region17: #{tpu_custom_call.1} parent=11 // pred_check
          %p540 = pneg %p79
        $region18: #{tpu_custom_call.1} parent=11 // pred_check_branch
          %542 = sbr.rel (%p540) target = $region20
        $region19: #{tpu_custom_call.1} parent=11 // pred_region
          _
        $region20: #{tpu_custom_call.1} parent=11 // pred_fallthru
          _
        // Predicated region
        $region21: #{tpu_custom_call.1} parent=11 // pred_check
          %p543 = pneg %p100
        $region22: #{tpu_custom_call.1} parent=11 // pred_check_branch
          %545 = sbr.rel (%p543) target = $region24
        $region23: #{tpu_custom_call.1} parent=11 // pred_region
          %s547 = ssub.s32 16, 16
          %548 = vsyncadd [#allocation10], %s547
          %s550 = sshll.u32 [#allocation9], 4
          %s551 = int_to_ptr.vmem [resolvable:$true] %s550
          %553 = dma.hbm_to_vmem [thread:$0]  %s2, 16, %s551, [#allocation10]
        $region24: #{tpu_custom_call.1} parent=11 // pred_fallthru
          _
        // Predicated region
        $region25: #{tpu_custom_call.1} parent=11 // pred_check
          %p554 = pneg %p173
        $region26: #{tpu_custom_call.1} parent=11 // pred_check_branch
          %556 = sbr.rel (%p554) target = $region28
        $region27: #{tpu_custom_call.1} parent=11 // pred_region
          %s558 = ssub.s32 512, 512
          %559 = vsyncadd [#allocation10], %s558
          %s560 = sshll.u32 [#allocation11], 4
          %s561 = int_to_ptr.vmem [resolvable:$true] %s560
          %566 = dma.hbm_to_vmem [thread:$0]  %s5, 512, %s561, [#allocation10], 64, 64, 4
        $region28: #{tpu_custom_call.1} parent=11 // pred_fallthru
          _
        // Predicated region
        $region29: #{tpu_custom_call.1} parent=11 // pred_check
          %p567 = pneg %p194
        $region30: #{tpu_custom_call.1} parent=11 // pred_check_branch
          %569 = sbr.rel (%p567) target = $region32
        $region31: #{tpu_custom_call.1} parent=11 // pred_region
          %s571 = ssub.s32 128, 128
          %572 = vsyncadd [#allocation13], %s571
          %s574 = sshll.u32 [#allocation12], 4
          %s575 = int_to_ptr.vmem [resolvable:$true] %s574
          %577 = dma.hbm_to_vmem [thread:$0]  %s6, 128, %s575, [#allocation13]
        $region32: #{tpu_custom_call.1} parent=11 // pred_fallthru
          _
        // Predicated region
        $region33: #{tpu_custom_call.1} parent=11 // pred_check
          %p578 = pneg %p215
        $region34: #{tpu_custom_call.1} parent=11 // pred_check_branch
          %580 = sbr.rel (%p578) target = $region36
        $region35: #{tpu_custom_call.1} parent=11 // pred_region
          %s582 = ssub.s32 16, 16
          %583 = vsyncadd [#allocation13], %s582
          %s585 = sshll.u32 [#allocation14], 4
          %s586 = int_to_ptr.vmem [resolvable:$true] %s585
          %588 = dma.hbm_to_vmem [thread:$0]  %s7, 16, %s586, [#allocation13]
        $region36: #{tpu_custom_call.1} parent=11 // pred_fallthru
          _
        // Predicated region
        $region37: #{tpu_custom_call.1} parent=11 // pred_check
          %p589 = pneg %p236
        $region38: #{tpu_custom_call.1} parent=11 // pred_check_branch
          %591 = sbr.rel (%p589) target = $region40
        $region39: #{tpu_custom_call.1} parent=11 // pred_region
          %s593 = ssub.s32 512, 512
          %594 = vsyncadd [#allocation16], %s593
          %s595 = sshll.u32 [#allocation15], 4
          %s596 = int_to_ptr.vmem [resolvable:$true] %s595
          %601 = dma.hbm_to_vmem [thread:$0]  %s8, 512, %s596, [#allocation16], 64, 64, 4
        $region40: #{tpu_custom_call.1} parent=11 // pred_fallthru
          _
        // Predicated region
        $region41: #{tpu_custom_call.1} parent=11 // pred_check
          %p602 = pneg %p257
        $region42: #{tpu_custom_call.1} parent=11 // pred_check_branch
          %604 = sbr.rel (%p602) target = $region44
        $region43: #{tpu_custom_call.1} parent=11 // pred_region
          %s606 = ssub.s32 128, 128
          %607 = vsyncadd [#allocation16], %s606
          %s609 = sshll.u32 [#allocation17], 4
          %s610 = int_to_ptr.vmem [resolvable:$true] %s609
          %612 = dma.hbm_to_vmem [thread:$0]  %s9, 128, %s610, [#allocation16]
        $region44: #{tpu_custom_call.1} parent=11 // pred_fallthru
          _
        // Predicated region
        $region45: #{tpu_custom_call.1} parent=11 // pred_check
          %p613 = pneg %p278
        $region46: #{tpu_custom_call.1} parent=11 // pred_check_branch
          %615 = sbr.rel (%p613) target = $region48
        $region47: #{tpu_custom_call.1} parent=11 // pred_region
          %s617 = ssub.s32 16, 16
          %618 = vsyncadd [#allocation19], %s617
          %s620 = sshll.u32 [#allocation18], 4
          %s621 = int_to_ptr.vmem [resolvable:$true] %s620
          %623 = dma.hbm_to_vmem [thread:$0]  %s10, 16, %s621, [#allocation19]
        $region48: #{tpu_custom_call.1} parent=11 // pred_fallthru
          _
        // Predicated region
        $region49: #{tpu_custom_call.1} parent=11 // pred_check
          %p624 = pneg %p299
        $region50: #{tpu_custom_call.1} parent=11 // pred_check_branch
          %626 = sbr.rel (%p624) target = $region52
        $region51: #{tpu_custom_call.1} parent=11 // pred_region
          %s628 = ssub.s32 16, 16
          %629 = vsyncadd [#allocation19], %s628
          %s631 = sshll.u32 [#allocation20], 4
          %s632 = int_to_ptr.vmem [resolvable:$true] %s631
          %634 = dma.hbm_to_vmem [thread:$0]  %s11, 16, %s632, [#allocation19]
        $region52: #{tpu_custom_call.1} parent=11 // pred_fallthru
          _
        // Predicated region
        $region53: #{tpu_custom_call.1} parent=11 // pred_check
          %p635 = pneg %p320
        $region54: #{tpu_custom_call.1} parent=11 // pred_check_branch
          %637 = sbr.rel (%p635) target = $region56
        $region55: #{tpu_custom_call.1} parent=11 // pred_region
          _
        $region56: #{tpu_custom_call.1} parent=11 // pred_fallthru
          _
        // Predicated region
        $region57: #{tpu_custom_call.1} parent=11 // pred_check
          %p638 = pneg %p341
        $region58: #{tpu_custom_call.1} parent=11 // pred_check_branch
          %640 = sbr.rel (%p638) target = $region60
        $region59: #{tpu_custom_call.1} parent=11 // pred_region
          %s642 = ssub.s32 16, 16
          %643 = vsyncadd [#allocation22], %s642
          %s645 = sshll.u32 [#allocation21], 4
          %s646 = int_to_ptr.vmem [resolvable:$true] %s645
          %648 = dma.hbm_to_vmem [thread:$0]  %s13, 16, %s646, [#allocation22]
        $region60: #{tpu_custom_call.1} parent=11 // pred_fallthru
          _
        // Predicated region
        $region61: #{tpu_custom_call.1} parent=11 // pred_check
          %p649 = pneg %p362
        $region62: #{tpu_custom_call.1} parent=11 // pred_check_branch
          %651 = sbr.rel (%p649) target = $region64
        $region63: #{tpu_custom_call.1} parent=11 // pred_region
          %s653 = ssub.s32 192, 192
          %654 = vsyncadd [#allocation22], %s653
          %s655 = sshll.u32 [#allocation23], 4
          %s656 = int_to_ptr.vmem [resolvable:$true] %s655
          %661 = dma.hbm_to_vmem [thread:$0]  %s14, 192, %s656, [#allocation22], 64, 64, 4
        $region64: #{tpu_custom_call.1} parent=11 // pred_fallthru
          _
        // Predicated region
        $region65: #{tpu_custom_call.1} parent=11 // pred_check
          %p662 = pneg %p383
        $region66: #{tpu_custom_call.1} parent=11 // pred_check_branch
          %664 = sbr.rel (%p662) target = $region68
        $region67: #{tpu_custom_call.1} parent=11 // pred_region
          %s666 = ssub.s32 16, 16
          %667 = vsyncadd [#allocation25], %s666
          %s669 = sshll.u32 [#allocation24], 4
          %s670 = int_to_ptr.vmem [resolvable:$true] %s669
          %672 = dma.hbm_to_vmem [thread:$0]  %s15, 16, %s670, [#allocation25]
        $region68: #{tpu_custom_call.1} parent=11 // pred_fallthru
          _
        // Predicated region
        $region69: #{tpu_custom_call.1} parent=11 // pred_check
          %p673 = pneg %p404
        $region70: #{tpu_custom_call.1} parent=11 // pred_check_branch
          %675 = sbr.rel (%p673) target = $region72
        $region71: #{tpu_custom_call.1} parent=11 // pred_region
          _
        $region72: #{tpu_custom_call.1} parent=11 // pred_fallthru
          _
        // Predicated region
        $region73: #{tpu_custom_call.1} parent=11 // pred_check
          %p676 = pneg %p425
        $region74: #{tpu_custom_call.1} parent=11 // pred_check_branch
          %678 = sbr.rel (%p676) target = $region76
        $region75: #{tpu_custom_call.1} parent=11 // pred_region
          %s680 = ssub.s32 16, 16
          %681 = vsyncadd [#allocation25], %s680
          %s683 = sshll.u32 [#allocation26], 4
          %s684 = int_to_ptr.vmem [resolvable:$true] %s683
          %686 = dma.hbm_to_vmem [thread:$0]  %s17, 16, %s684, [#allocation25]
        $region76: #{tpu_custom_call.1} parent=11 // pred_fallthru
          _
        // Predicated region
        $region77: #{tpu_custom_call.1} parent=11 // pred_check
          %p687 = pneg %p446
        $region78: #{tpu_custom_call.1} parent=11 // pred_check_branch
          %689 = sbr.rel (%p687) target = $region80
        $region79: #{tpu_custom_call.1} parent=11 // pred_region
          _
        $region80: #{tpu_custom_call.1} parent=11 // pred_fallthru
          _
      $region12: #{tpu_custom_call.1} parent=5 // pred_fallthru
        _
      %p690 = scmp.lt.s32.totalorder %s37, 8
      // Predicated region
      $region81: #{tpu_custom_call.1} parent=5 // pred_check
        %p691 = pneg %p690
      $region82: #{tpu_custom_call.1} parent=5 // pred_check_branch
        %693 = sbr.rel (%p691) target = $region84
      $region83: #{tpu_custom_call.1} parent=5 // pred_region
        // Predicated region
        $region85: #{tpu_custom_call.1} parent=83 // pred_check
          %p694 = pneg %p120
        $region86: #{tpu_custom_call.1} parent=83 // pred_check_branch
          %696 = sbr.rel (%p694) target = $region88
        $region87: #{tpu_custom_call.1} parent=83 // pred_region
          %p697 = scmp.lt.s32.totalorder %s37, 7
          %s698 = scalar_select %p697, %s37, 7
          %s699 = smul.addr %s698, 5
          %s700 = smul.addr %s699, 8
          %s701 = scalar_lea.vmem %s3, %s700
        $region88: #{tpu_custom_call.1} parent=83 // pred_fallthru
          _
        // Predicated region
        $region89: #{tpu_custom_call.1} parent=83 // pred_check
          %p702 = pneg %p146
        $region90: #{tpu_custom_call.1} parent=83 // pred_check_branch
          %704 = sbr.rel (%p702) target = $region92
        $region91: #{tpu_custom_call.1} parent=83 // pred_region
          %p705 = scmp.lt.s32.totalorder %s37, 7
          %s706 = scalar_select %p705, %s37, 7
          %s707 = smul.addr %s706, 5
          %s708 = smul.addr %s707, 8
          %s709 = scalar_lea.vmem %s4, %s708
        $region92: #{tpu_custom_call.1} parent=83 // pred_fallthru
          _
      $region84: #{tpu_custom_call.1} parent=5 // pred_fallthru
        _
      %p710 = scmp.le.s32.totalorder 1, %s37
      %p711 = scmp.lt.s32.totalorder %s37, 9
      %p712 = pnand %p710, %p711
      %p713 = pneg %p712
      // Predicated region
      $region93: #{tpu_custom_call.1} parent=5 // pred_check
        _
      $region94: #{tpu_custom_call.1} parent=5 // pred_check_branch
        %715 = sbr.rel (%p712) target = $region96
      $region95: #{tpu_custom_call.1} parent=5 // pred_region
        %s716 = ssub.s32 %s37, 1
        // Predicated region
        $region97: #{tpu_custom_call.1} parent=95 // pred_check
          %p717 = pneg %p58
        $region98: #{tpu_custom_call.1} parent=95 // pred_check_branch
          %719 = sbr.rel (%p717) target = $region100
        $region99: #{tpu_custom_call.1} parent=95 // pred_region
          %720 = dma.done [#allocation7], 128
        $region100: #{tpu_custom_call.1} parent=95 // pred_fallthru
          _
        // Predicated region
        $region101: #{tpu_custom_call.1} parent=95 // pred_check
          %p721 = pneg %p100
        $region102: #{tpu_custom_call.1} parent=95 // pred_check_branch
          %723 = sbr.rel (%p721) target = $region104
        $region103: #{tpu_custom_call.1} parent=95 // pred_region
          %724 = dma.done [#allocation10], 16
        $region104: #{tpu_custom_call.1} parent=95 // pred_fallthru
          _
        // Predicated region
        $region105: #{tpu_custom_call.1} parent=95 // pred_check
          %p725 = pneg %p173
        $region106: #{tpu_custom_call.1} parent=95 // pred_check_branch
          %727 = sbr.rel (%p725) target = $region108
        $region107: #{tpu_custom_call.1} parent=95 // pred_region
          %728 = dma.done [#allocation10], 512
        $region108: #{tpu_custom_call.1} parent=95 // pred_fallthru
          _
        // Predicated region
        $region109: #{tpu_custom_call.1} parent=95 // pred_check
          %p729 = pneg %p194
        $region110: #{tpu_custom_call.1} parent=95 // pred_check_branch
          %731 = sbr.rel (%p729) target = $region112
        $region111: #{tpu_custom_call.1} parent=95 // pred_region
          %732 = dma.done [#allocation13], 128
        $region112: #{tpu_custom_call.1} parent=95 // pred_fallthru
          _
        // Predicated region
        $region113: #{tpu_custom_call.1} parent=95 // pred_check
          %p733 = pneg %p215
        $region114: #{tpu_custom_call.1} parent=95 // pred_check_branch
          %735 = sbr.rel (%p733) target = $region116
        $region115: #{tpu_custom_call.1} parent=95 // pred_region
          %736 = dma.done [#allocation13], 16
        $region116: #{tpu_custom_call.1} parent=95 // pred_fallthru
          _
        // Predicated region
        $region117: #{tpu_custom_call.1} parent=95 // pred_check
          %p737 = pneg %p236
        $region118: #{tpu_custom_call.1} parent=95 // pred_check_branch
          %739 = sbr.rel (%p737) target = $region120
        $region119: #{tpu_custom_call.1} parent=95 // pred_region
          %740 = dma.done [#allocation16], 512
        $region120: #{tpu_custom_call.1} parent=95 // pred_fallthru
          _
        // Predicated region
        $region121: #{tpu_custom_call.1} parent=95 // pred_check
          %p741 = pneg %p257
        $region122: #{tpu_custom_call.1} parent=95 // pred_check_branch
          %743 = sbr.rel (%p741) target = $region124
        $region123: #{tpu_custom_call.1} parent=95 // pred_region
          %744 = dma.done [#allocation16], 128
        $region124: #{tpu_custom_call.1} parent=95 // pred_fallthru
          _
        // Predicated region
        $region125: #{tpu_custom_call.1} parent=95 // pred_check
          %p745 = pneg %p278
        $region126: #{tpu_custom_call.1} parent=95 // pred_check_branch
          %747 = sbr.rel (%p745) target = $region128
        $region127: #{tpu_custom_call.1} parent=95 // pred_region
          %748 = dma.done [#allocation19], 16
        $region128: #{tpu_custom_call.1} parent=95 // pred_fallthru
          _
        // Predicated region
        $region129: #{tpu_custom_call.1} parent=95 // pred_check
          %p749 = pneg %p299
        $region130: #{tpu_custom_call.1} parent=95 // pred_check_branch
          %751 = sbr.rel (%p749) target = $region132
        $region131: #{tpu_custom_call.1} parent=95 // pred_region
          %752 = dma.done [#allocation19], 16
        $region132: #{tpu_custom_call.1} parent=95 // pred_fallthru
          _
        // Predicated region
        $region133: #{tpu_custom_call.1} parent=95 // pred_check
          %p753 = pneg %p341
        $region134: #{tpu_custom_call.1} parent=95 // pred_check_branch
          %755 = sbr.rel (%p753) target = $region136
        $region135: #{tpu_custom_call.1} parent=95 // pred_region
          %756 = dma.done [#allocation22], 16
        $region136: #{tpu_custom_call.1} parent=95 // pred_fallthru
          _
        // Predicated region
        $region137: #{tpu_custom_call.1} parent=95 // pred_check
          %p757 = pneg %p362
        $region138: #{tpu_custom_call.1} parent=95 // pred_check_branch
          %759 = sbr.rel (%p757) target = $region140
        $region139: #{tpu_custom_call.1} parent=95 // pred_region
          %760 = dma.done [#allocation22], 192
        $region140: #{tpu_custom_call.1} parent=95 // pred_fallthru
          _
        // Predicated region
        $region141: #{tpu_custom_call.1} parent=95 // pred_check
          %p761 = pneg %p383
        $region142: #{tpu_custom_call.1} parent=95 // pred_check_branch
          %763 = sbr.rel (%p761) target = $region144
        $region143: #{tpu_custom_call.1} parent=95 // pred_region
          %764 = dma.done [#allocation25], 16
        $region144: #{tpu_custom_call.1} parent=95 // pred_fallthru
          _
        // Predicated region
        $region145: #{tpu_custom_call.1} parent=95 // pred_check
          %p765 = pneg %p425
        $region146: #{tpu_custom_call.1} parent=95 // pred_check_branch
          %767 = sbr.rel (%p765) target = $region148
        $region147: #{tpu_custom_call.1} parent=95 // pred_region
          %768 = dma.done [#allocation25], 16
        $region148: #{tpu_custom_call.1} parent=95 // pred_fallthru
          _
        %p769 = pneg %p58
        %p770 = pneg %p55
        %p771 = pneg %p79
        %p772 = pneg %p76
        %p773 = pneg %p100
        %p774 = pneg %p97
        %p775 = scmp.lt.s32.totalorder %s42, 7
        %s776 = scalar_select %p775, %s42, 7
        %s777 = smul.addr %s776, 5
        %s778 = smul.addr %s777, 8
        %s779 = scalar_lea.vmem %s3, %s778
        %p780 = pneg %p126
        %p781 = pneg %p123
        %p782 = scmp.lt.s32.totalorder %s42, 7
        %s783 = scalar_select %p782, %s42, 7
        %s784 = smul.addr %s783, 5
        %s785 = smul.addr %s784, 8
        %s786 = scalar_lea.vmem %s4, %s785
        %p787 = pneg %p152
        %p788 = pneg %p149
        %p789 = pneg %p173
        %p790 = pneg %p170
        %p791 = pneg %p194
        %p792 = pneg %p191
        %p793 = pneg %p215
        %p794 = pneg %p212
        %p795 = pneg %p236
        %p796 = pneg %p233
        %p797 = pneg %p257
        %p798 = pneg %p254
        %p799 = pneg %p278
        %p800 = pneg %p275
        %p801 = pneg %p299
        %p802 = pneg %p296
        %p803 = pneg %p320
        %p804 = pneg %p317
        %p805 = pneg %p341
        %p806 = pneg %p338
        %p807 = pneg %p362
        %p808 = pneg %p359
        %p809 = pneg %p383
        %p810 = pneg %p380
        %p811 = pneg %p404
        %p812 = pneg %p401
        %p813 = pneg %p425
        %p814 = pneg %p422
        %p815 = pneg %p446
        %p816 = pneg %p443
        %p817 = pneg %p467
        %p818 = pneg %p464
        %p819 = pneg %p488
        %p820 = pneg %p485
        %p821 = pneg %p514
        %p822 = pneg %p511
        %s823 = sand.u32 %s42, 1
        %s824 = scalar_lea.sflag [#allocation8], %s823
        %s825 = sand.u32 %s501, 1
        %s826 = scalar_lea.vmem [#allocation30], %s825
        %p827 = scmp.lt.s32.totalorder %s42, 7
        %s828 = scalar_select %p827, %s42, 7
        %s829 = smul.addr %s828, 5
        %s830 = smul.addr %s829, 8
        %s831 = scalar_lea.vmem %s3, %s830
        %p832 = scmp.lt.s32.totalorder %s42, 7
        %s833 = scalar_select %p832, %s42, 7
        %s834 = smul.addr %s833, 5
        %s835 = smul.addr %s834, 8
        %s836 = scalar_lea.vmem %s4, %s835
        %p838 = scmp.eq.s32.totalorder %s42, 0
        // Predicated region
        $region149: #{tpu_custom_call.1} parent=95 // pred_check
          %p839 = pneg %p838
        $region150: #{tpu_custom_call.1} parent=95 // pred_check_branch
          %841 = sbr.rel (%p839) target = $region152
        $region151: #{tpu_custom_call.1} parent=95 // pred_region
          %v842 = vld [vmem:[%s1] sm:$0xff]
          %v843 = vld [vmem:[%s1 + $0x8] sm:$0xff]
          %v844 = vld [vmem:[%s1 + $0x10] sm:$0xff]
          %v845 = vld [vmem:[%s1 + $0x18] sm:$0xff]
          %v846 = vld [vmem:[%s1 + $0x20] sm:$0xff]
          %vm847 = vcmask 523264
          %848 = vst.msk [vmem:[#allocation2] sm:$0xff] %vm847, %v842
          %849 = vst.msk [vmem:[#allocation2 + $0x8] sm:$0xff] %vm847, %v843
          %850 = vst.msk [vmem:[#allocation2 + $0x10] sm:$0xff] %vm847, %v844
          %851 = vst.msk [vmem:[#allocation2 + $0x18] sm:$0xff] %vm847, %v845
          %852 = vst.msk [vmem:[#allocation2 + $0x20] sm:$0xff] %vm847, %v846
          %v853 = vld [vmem:[#allocation9] sm:$0x1]
          %vm854 = vcmask 319488
          %855 = vst.msk [vmem:[#allocation3] sm:$0x1] %vm854, %v853
          %v856 = vld [vmem:[#allocation6] sm:$0xff]
          %v857 = vld [vmem:[#allocation12] sm:$0xff]
          %v858 = vld [vmem:[#allocation14] sm:$0x1]
          %v860 = vlaneseq
          %v861 = vshrl.u32 %v860, 7
          %v862 = vsub.s32 0, %v861
          %v863 = vrot.slane %v858, %v862
          %vm865 = vcmask 64512
          %v867 = vsel %vm865, %v856, 0
          %869 = vmatprep.subr.mxu0 0.0
          %870 = vmatpush1.msra.mxu0 %v857
          %871 = vmatprep.subr.mxu0 0.0
          %872 = vmatpush1.msra.mxu0 0.0
          %873 = vmatprep.subr.mxu0 0.0
          %874 = vmatpush1.msra.mxu0 0.0
          %875 = vmatprep.subr.mxu0 0.0
          %876 = vmatpush1.msra.mxu0 0.0
          %877 = vmatprep.subr.mxu0 0.0
          %878 = vmatpush1.msra.mxu0 0.0
          %879 = vmatprep.subr.mxu0 0.0
          %880 = vmatpush1.msra.mxu0 0.0
          %881 = vmatprep.subr.mxu0 0.0
          %882 = vmatpush1.msra.mxu0 0.0
          %883 = vmatprep.subr.mxu0 0.0
          %884 = vmatpush1.msra.mxu0 0.0
          %885 = vmatprep.subr.mxu0 0.0
          %886 = vmatpush1.msra.mxu0 0.0
          %887 = vmatprep.subr.mxu0 0.0
          %888 = vmatpush1.msra.mxu0 0.0
          %889 = vmatprep.subr.mxu0 0.0
          %890 = vmatpush1.msra.mxu0 0.0
          %891 = vmatprep.subr.mxu0 0.0
          %892 = vmatpush1.msra.mxu0 0.0
          %893 = vmatprep.subr.mxu0 0.0
          %894 = vmatpush1.msra.mxu0 0.0
          %895 = vmatprep.subr.mxu0 0.0
          %896 = vmatpush1.msra.mxu0 0.0
          %897 = vmatprep.subr.mxu0 0.0
          %898 = vmatpush1.msra.mxu0 0.0
          %899 = vmatprep.subr.mxu0 0.0
          %900 = vmatpush1.msra.mxu0 0.0
          %901 = vmatprep.subr.mxu0 0.0
          %902 = vmatpush1.msra.mxu0 0.0
          %903 = vmatprep.subr.mxu0 0.0
          %904 = vmatpush1.msra.mxu0 0.0
          %905 = vmatprep.subr.mxu0 0.0
          %906 = vmatpush1.msra.mxu0 0.0
          %907 = vmatprep.subr.mxu0 0.0
          %908 = vmatpush1.msra.mxu0 0.0
          %909 = vmatprep.subr.mxu0 0.0
          %910 = vmatpush1.msra.mxu0 0.0
          %911 = vmatprep.subr.mxu0 0.0
          %912 = vmatpush1.msra.mxu0 0.0
          %913 = vmatprep.subr.mxu0 0.0
          %914 = vmatpush1.msra.mxu0 0.0
          %915 = vmatprep.subr.mxu0 0.0
          %916 = vmatpush1.msra.mxu0 0.0
          %917 = vmatprep.subr.mxu0 0.0
          %918 = vmatpush1.msra.mxu0 0.0
          %919 = vmatprep.subr.mxu0 0.0
          %920 = vmatpush1.msra.mxu0 0.0
          %921 = vmatprep.subr.mxu0 0.0
          %922 = vmatpush1.msra.mxu0 0.0
          %923 = vmatprep.subr.mxu0 0.0
          %924 = vmatpush1.msra.mxu0 0.0
          %925 = vmatprep.subr.mxu0 0.0
          %926 = vmatpush1.msra.mxu0 0.0
          %927 = vmatprep.subr.mxu0 0.0
          %928 = vmatpush1.msra.mxu0 0.0
          %929 = vmatprep.subr.mxu0 0.0
          %930 = vmatpush1.msra.mxu0 0.0
          %931 = vmatprep.subr.mxu0 0.0
          %932 = vmatpush1.msra.mxu0 0.0
          %933 = vmatprep.mubr.f32.mxu0 0.0
          %934 = vmatmul.mubr.f32.gmra.mrb[0].mxu0 %v867
          %v935 = vpop.f32.mrb[0].mxu0
          %v936 = vadd.f32 %v863, %v935
          %v937 = vpop.f32.mrb[0].mxu0
          %938 = vdwg.mxu0
          %939 = vst [vmem:[#allocation4] sm:$0xff] %v936
          %v940 = vld [vmem:[#allocation17] sm:$0xff]
          %v941 = vld [vmem:[#allocation18] sm:$0x1]
          %v943 = vlaneseq
          %v944 = vshrl.u32 %v943, 7
          %v945 = vsub.s32 0, %v944
          %v946 = vrot.slane %v941, %v945
          %948 = vmatprep.subr.mxu0 0.0
          %949 = vmatpush1.msra.mxu0 %v940
          %950 = vmatprep.subr.mxu0 0.0
          %951 = vmatpush1.msra.mxu0 0.0
          %952 = vmatprep.subr.mxu0 0.0
          %953 = vmatpush1.msra.mxu0 0.0
          %954 = vmatprep.subr.mxu0 0.0
          %955 = vmatpush1.msra.mxu0 0.0
          %956 = vmatprep.subr.mxu0 0.0
          %957 = vmatpush1.msra.mxu0 0.0
          %958 = vmatprep.subr.mxu0 0.0
          %959 = vmatpush1.msra.mxu0 0.0
          %960 = vmatprep.subr.mxu0 0.0
          %961 = vmatpush1.msra.mxu0 0.0
          %962 = vmatprep.subr.mxu0 0.0
          %963 = vmatpush1.msra.mxu0 0.0
          %964 = vmatprep.subr.mxu0 0.0
          %965 = vmatpush1.msra.mxu0 0.0
          %966 = vmatprep.subr.mxu0 0.0
          %967 = vmatpush1.msra.mxu0 0.0
          %968 = vmatprep.subr.mxu0 0.0
          %969 = vmatpush1.msra.mxu0 0.0
          %970 = vmatprep.subr.mxu0 0.0
          %971 = vmatpush1.msra.mxu0 0.0
          %972 = vmatprep.subr.mxu0 0.0
          %973 = vmatpush1.msra.mxu0 0.0
          %974 = vmatprep.subr.mxu0 0.0
          %975 = vmatpush1.msra.mxu0 0.0
          %976 = vmatprep.subr.mxu0 0.0
          %977 = vmatpush1.msra.mxu0 0.0
          %978 = vmatprep.subr.mxu0 0.0
          %979 = vmatpush1.msra.mxu0 0.0
          %980 = vmatprep.subr.mxu0 0.0
          %981 = vmatpush1.msra.mxu0 0.0
          %982 = vmatprep.subr.mxu0 0.0
          %983 = vmatpush1.msra.mxu0 0.0
          %984 = vmatprep.subr.mxu0 0.0
          %985 = vmatpush1.msra.mxu0 0.0
          %986 = vmatprep.subr.mxu0 0.0
          %987 = vmatpush1.msra.mxu0 0.0
          %988 = vmatprep.subr.mxu0 0.0
          %989 = vmatpush1.msra.mxu0 0.0
          %990 = vmatprep.subr.mxu0 0.0
          %991 = vmatpush1.msra.mxu0 0.0
          %992 = vmatprep.subr.mxu0 0.0
          %993 = vmatpush1.msra.mxu0 0.0
          %994 = vmatprep.subr.mxu0 0.0
          %995 = vmatpush1.msra.mxu0 0.0
          %996 = vmatprep.subr.mxu0 0.0
          %997 = vmatpush1.msra.mxu0 0.0
          %998 = vmatprep.subr.mxu0 0.0
          %999 = vmatpush1.msra.mxu0 0.0
          %1000 = vmatprep.subr.mxu0 0.0
          %1001 = vmatpush1.msra.mxu0 0.0
          %1002 = vmatprep.subr.mxu0 0.0
          %1003 = vmatpush1.msra.mxu0 0.0
          %1004 = vmatprep.subr.mxu0 0.0
          %1005 = vmatpush1.msra.mxu0 0.0
          %1006 = vmatprep.subr.mxu0 0.0
          %1007 = vmatpush1.msra.mxu0 0.0
          %1008 = vmatprep.subr.mxu0 0.0
          %1009 = vmatpush1.msra.mxu0 0.0
          %1010 = vmatprep.subr.mxu0 0.0
          %1011 = vmatpush1.msra.mxu0 0.0
          %1012 = vmatprep.mubr.f32.mxu0 0.0
          %1013 = vmatmul.mubr.f32.gmra.mrb[0].mxu0 %v867
          %v1014 = vpop.f32.mrb[0].mxu0
          %v1015 = vadd.f32 %v946, %v1014
          %v1016 = vpop.f32.mrb[0].mxu0
          %1017 = vdwg.mxu0
          %1018 = vst [vmem:[#allocation5] sm:$0xff] %v1015
        $region152: #{tpu_custom_call.1} parent=95 // pred_fallthru
          _
        %v1019 = vld [vmem:[#allocation2] sm:$0xff]
        %v1020 = vld [vmem:[#allocation2 + $0x8] sm:$0xff]
        %v1021 = vld [vmem:[#allocation2 + $0x10] sm:$0xff]
        %v1022 = vld [vmem:[#allocation2 + $0x18] sm:$0xff]
        %v1023 = vld [vmem:[#allocation2 + $0x20] sm:$0xff]
        %v1024 = vld [vmem:[#allocation3] sm:$0x1]
        %v1025 = vld [vmem:[%s831] sm:$0xff]
        %v1026 = vld [vmem:[%s831 + $0x8] sm:$0xff]
        %v1027 = vld [vmem:[%s831 + $0x10] sm:$0xff]
        %v1028 = vld [vmem:[%s831 + $0x18] sm:$0xff]
        %v1029 = vld [vmem:[%s831 + $0x20] sm:$0xff]
        %v1030 = vld [vmem:[%s836] sm:$0xff]
        %v1031 = vld [vmem:[%s836 + $0x8] sm:$0xff]
        %v1032 = vld [vmem:[%s836 + $0x10] sm:$0xff]
        %v1033 = vld [vmem:[%s836 + $0x18] sm:$0xff]
        %v1034 = vld [vmem:[%s836 + $0x20] sm:$0xff]
        %s1035 = scalar_lea.vmem [#allocation4], %s42
        %v1036 = vld [vmem:[%s1035] sm:$0x1]
        %s1037 = scalar_lea.vmem [#allocation5], %s42
        %v1038 = vld [vmem:[%s1037] sm:$0x1]
        %v1039 = vpack.c.bf16 %v1020, %v1019
        %v1040 = vpack.c.bf16 %v1022, %v1021
        %v1041 = vpack.c.bf16 %v1023, %v1023
        %v1042 = vld [vmem:[#allocation11] sm:$0xf]
        %v1043 = vld [vmem:[#allocation11 + $0x4] sm:$0xf]
        %v1044 = vld [vmem:[#allocation11 + $0x8] sm:$0xf]
        %v1045 = vld [vmem:[#allocation11 + $0xc] sm:$0xf]
        %v1046 = vld [vmem:[#allocation11 + $0x10] sm:$0xf]
        %v1047 = vld [vmem:[#allocation11 + $0x14] sm:$0xf]
        %v1048 = vld [vmem:[#allocation11 + $0x18] sm:$0xf]
        %v1049 = vld [vmem:[#allocation11 + $0x1c] sm:$0xf]
        %v1050 = vlaneseq
        %v1051 = vshrl.u32 %v1050, 7
        %v1052 = vsub.s32 0, %v1051
        %v1053 = vrot.slane %v1036, %v1052
        %v1062 = vunpack.c.l.b16 %v1042
        %v1063 = vunpack.c.l.b16 %v1043
        %v1064 = vunpack.c.l.b16 %v1044
        %v1065 = vunpack.c.l.b16 %v1045
        %v1066 = vunpack.c.l.b16 %v1046
        %v1067 = vunpack.c.l.b16 %v1047
        %v1068 = vunpack.c.l.b16 %v1048
        %v1069 = vunpack.c.l.b16 %v1049
        %v1070 = vpack.c.b16 %v1063, %v1062
        %v1071 = vpack.c.b16 %v1065, %v1064
        %v1072 = vpack.c.b16 %v1067, %v1066
        %v1073 = vpack.c.b16 %v1069, %v1068
        %vm1078 = vcmask 523264
        %v1080 = vsel %vm1078, %v1039, 0
        %v1083 = vsel %vm1078, %v1040, 0
        %v1086 = vsel %vm1078, %v1041, 0
        %1088 = vmatprep.subr.bf16.mxu0 0
        %1089 = vmatpush1.bf16.msra.mxu0 %v1070
        %1090 = vmatprep.subr.bf16.mxu0 0
        %1091 = vmatpush1.bf16.msra.mxu0 %v1071
        %1092 = vmatprep.subr.bf16.mxu0 0
        %1093 = vmatpush1.bf16.msra.mxu0 %v1072
        %1094 = vmatprep.subr.bf16.mxu0 0
        %1095 = vmatpush1.bf16.msra.mxu0 %v1073
        %1096 = vmatprep.subr.bf16.mxu0 0
        %1097 = vmatpush1.bf16.msra.mxu0 0
        %1098 = vmatprep.subr.bf16.mxu0 0
        %1099 = vmatpush1.bf16.msra.mxu0 0
        %1100 = vmatprep.subr.bf16.mxu0 0
        %1101 = vmatpush1.bf16.msra.mxu0 0
        %1102 = vmatprep.subr.bf16.mxu0 0
        %1103 = vmatpush1.bf16.msra.mxu0 0
        %1104 = vmatprep.subr.bf16.mxu0 0
        %1105 = vmatpush1.bf16.msra.mxu0 0
        %1106 = vmatprep.subr.bf16.mxu0 0
        %1107 = vmatpush1.bf16.msra.mxu0 0
        %1108 = vmatprep.subr.bf16.mxu0 0
        %1109 = vmatpush1.bf16.msra.mxu0 0
        %1110 = vmatprep.subr.bf16.mxu0 0
        %1111 = vmatpush1.bf16.msra.mxu0 0
        %1112 = vmatprep.subr.bf16.mxu0 0
        %1113 = vmatpush1.bf16.msra.mxu0 0
        %1114 = vmatprep.subr.bf16.mxu0 0
        %1115 = vmatpush1.bf16.msra.mxu0 0
        %1116 = vmatprep.subr.bf16.mxu0 0
        %1117 = vmatpush1.bf16.msra.mxu0 0
        %1118 = vmatprep.subr.bf16.mxu0 0
        %1119 = vmatpush1.bf16.msra.mxu0 0
        %1120 = vmatprep.mubr.bf16.mxu0 0
        %1121 = vmatmul.mubr.bf16.gmra.mrb[0].mxu0 %v1080
        %v1122 = vpop.f32.mrb[0].mxu0
        %v1123 = vadd.f32 %v1053, %v1122
        %v1124 = vpop.f32.mrb[0].mxu0
        %v1125 = vpop.f32.mrb[0].mxu0
        %v1126 = vadd.f32 %v1053, %v1125
        %v1127 = vpop.f32.mrb[0].mxu0
        %1128 = vmatprep.mubr.bf16.mxu0 0
        %1129 = vmatmul.mubr.bf16.gmra.mrb[0].mxu0 %v1083
        %v1130 = vpop.f32.mrb[0].mxu0
        %v1131 = vadd.f32 %v1053, %v1130
        %v1132 = vpop.f32.mrb[0].mxu0
        %v1133 = vpop.f32.mrb[0].mxu0
        %v1134 = vadd.f32 %v1053, %v1133
        %v1135 = vpop.f32.mrb[0].mxu0
        %1136 = vmatprep.mubr.bf16.mxu0 0
        %1137 = vmatmul.mubr.bf16.gmra.mrb[0].mxu0 %v1086
        %v1138 = vpop.f32.mrb[0].mxu0
        %v1139 = vadd.f32 %v1053, %v1138
        %v1140 = vpop.f32.mrb[0].mxu0
        %v1141 = vpop.f32.mrb[0].mxu0
        %v1142 = vpop.f32.mrb[0].mxu0
        %1143 = vdwg.mxu0
        %v1144 = vsub.f32 0.0, %v1123
        %v1145 = vsub.f32 0.0, %v1126
        %v1146 = vsub.f32 0.0, %v1131
        %v1147 = vsub.f32 0.0, %v1134
        %v1148 = vsub.f32 0.0, %v1139
        %v1149 = vmul.f32 %v1144, 1.442695
        %v1150 = vpow.pop %v1149
        %v1151 = vmul.f32 %v1145, 1.442695
        %v1152 = vpow.pop %v1151
        %v1153 = vmul.f32 %v1146, 1.442695
        %v1154 = vpow.pop %v1153
        %v1155 = vmul.f32 %v1147, 1.442695
        %v1156 = vpow.pop %v1155
        %v1157 = vmul.f32 %v1148, 1.442695
        %v1158 = vpow.pop %v1157
        %v1159 = vadd.f32 %v1150, 1.0
        %v1160 = vadd.f32 %v1152, 1.0
        %v1161 = vadd.f32 %v1154, 1.0
        %v1162 = vadd.f32 %v1156, 1.0
        %v1163 = vadd.f32 %v1158, 1.0
        %v1164 = vrcp.pop %v1159
        %v1165 = vrcp.pop %v1160
        %v1166 = vrcp.pop %v1161
        %v1167 = vrcp.pop %v1162
        %v1168 = vrcp.pop %v1163
        %1174 = vrot.lane.b32.xlu0 %v1019, 64
        %v1175 = vpop.permute.xlu0 %1174
        %1176 = vrot.lane.b32.xlu0 %v1020, 64
        %v1177 = vpop.permute.xlu0 %1176
        %1178 = vrot.lane.b32.xlu0 %v1021, 64
        %v1179 = vpop.permute.xlu0 %1178
        %1180 = vrot.lane.b32.xlu0 %v1022, 64
        %v1181 = vpop.permute.xlu0 %1180
        %1182 = vrot.lane.b32.xlu0 %v1023, 64
        %v1183 = vpop.permute.xlu0 %1182
        %v1189 = vmul.f32 %v1164, %v1175
        %v1190 = vmul.f32 %v1165, %v1177
        %v1191 = vmul.f32 %v1166, %v1179
        %v1192 = vmul.f32 %v1167, %v1181
        %v1193 = vmul.f32 %v1168, %v1183
        %v1194 = vpack.c.bf16 %v1190, %v1189
        %v1195 = vpack.c.bf16 %v1192, %v1191
        %v1196 = vpack.c.bf16 %v1193, %v1193
        %v1197 = vld [vmem:[#allocation15] sm:$0xf]
        %v1198 = vld [vmem:[#allocation15 + $0x4] sm:$0xf]
        %v1199 = vld [vmem:[#allocation15 + $0x8] sm:$0xf]
        %v1200 = vld [vmem:[#allocation15 + $0xc] sm:$0xf]
        %v1201 = vld [vmem:[#allocation15 + $0x10] sm:$0xf]
        %v1202 = vld [vmem:[#allocation15 + $0x14] sm:$0xf]
        %v1203 = vld [vmem:[#allocation15 + $0x18] sm:$0xf]
        %v1204 = vld [vmem:[#allocation15 + $0x1c] sm:$0xf]
        %v1205 = vlaneseq
        %v1206 = vshrl.u32 %v1205, 7
        %v1207 = vsub.s32 0, %v1206
        %v1208 = vrot.slane %v1038, %v1207
        %1212 = vrot.lane.b32.xlu0 %v1194, 64
        %v1213 = vpop.permute.xlu0 %1212
        %1214 = vrot.lane.b32.xlu0 %v1195, 64
        %v1215 = vpop.permute.xlu0 %1214
        %1216 = vrot.lane.b32.xlu0 %v1196, 64
        %v1217 = vpop.permute.xlu0 %1216
        %v1226 = vunpack.c.l.b16 %v1197
        %v1227 = vunpack.c.l.b16 %v1198
        %v1228 = vunpack.c.l.b16 %v1199
        %v1229 = vunpack.c.l.b16 %v1200
        %v1230 = vunpack.c.l.b16 %v1201
        %v1231 = vunpack.c.l.b16 %v1202
        %v1232 = vunpack.c.l.b16 %v1203
        %v1233 = vunpack.c.l.b16 %v1204
        %v1234 = vpack.c.b16 %v1227, %v1226
        %v1235 = vpack.c.b16 %v1229, %v1228
        %v1236 = vpack.c.b16 %v1231, %v1230
        %v1237 = vpack.c.b16 %v1233, %v1232
        %v1243 = vsel %vm1078, %v1213, 0
        %v1246 = vsel %vm1078, %v1215, 0
        %v1249 = vsel %vm1078, %v1217, 0
        %1251 = vmatprep.subr.bf16.mxu0 0
        %1252 = vmatpush1.bf16.msra.mxu0 %v1234
        %1253 = vmatprep.subr.bf16.mxu0 0
        %1254 = vmatpush1.bf16.msra.mxu0 %v1235
        %1255 = vmatprep.subr.bf16.mxu0 0
        %1256 = vmatpush1.bf16.msra.mxu0 %v1236
        %1257 = vmatprep.subr.bf16.mxu0 0
        %1258 = vmatpush1.bf16.msra.mxu0 %v1237
        %1259 = vmatprep.subr.bf16.mxu0 0
        %1260 = vmatpush1.bf16.msra.mxu0 0
        %1261 = vmatprep.subr.bf16.mxu0 0
        %1262 = vmatpush1.bf16.msra.mxu0 0
        %1263 = vmatprep.subr.bf16.mxu0 0
        %1264 = vmatpush1.bf16.msra.mxu0 0
        %1265 = vmatprep.subr.bf16.mxu0 0
        %1266 = vmatpush1.bf16.msra.mxu0 0
        %1267 = vmatprep.subr.bf16.mxu0 0
        %1268 = vmatpush1.bf16.msra.mxu0 0
        %1269 = vmatprep.subr.bf16.mxu0 0
        %1270 = vmatpush1.bf16.msra.mxu0 0
        %1271 = vmatprep.subr.bf16.mxu0 0
        %1272 = vmatpush1.bf16.msra.mxu0 0
        %1273 = vmatprep.subr.bf16.mxu0 0
        %1274 = vmatpush1.bf16.msra.mxu0 0
        %1275 = vmatprep.subr.bf16.mxu0 0
        %1276 = vmatpush1.bf16.msra.mxu0 0
        %1277 = vmatprep.subr.bf16.mxu0 0
        %1278 = vmatpush1.bf16.msra.mxu0 0
        %1279 = vmatprep.subr.bf16.mxu0 0
        %1280 = vmatpush1.bf16.msra.mxu0 0
        %1281 = vmatprep.subr.bf16.mxu0 0
        %1282 = vmatpush1.bf16.msra.mxu0 0
        %1283 = vmatprep.mubr.bf16.mxu0 0
        %1284 = vmatmul.mubr.bf16.gmra.mrb[0].mxu0 %v1243
        %v1285 = vpop.f32.mrb[0].mxu0
        %v1286 = vadd.f32 %v1208, %v1285
        %v1287 = vpop.f32.mrb[0].mxu0
        %v1288 = vpop.f32.mrb[0].mxu0
        %v1289 = vadd.f32 %v1208, %v1288
        %v1290 = vpop.f32.mrb[0].mxu0
        %1291 = vmatprep.mubr.bf16.mxu0 0
        %1292 = vmatmul.mubr.bf16.gmra.mrb[0].mxu0 %v1246
        %v1293 = vpop.f32.mrb[0].mxu0
        %v1294 = vadd.f32 %v1208, %v1293
        %v1295 = vpop.f32.mrb[0].mxu0
        %v1296 = vpop.f32.mrb[0].mxu0
        %v1297 = vadd.f32 %v1208, %v1296
        %v1298 = vpop.f32.mrb[0].mxu0
        %1299 = vmatprep.mubr.bf16.mxu0 0
        %1300 = vmatmul.mubr.bf16.gmra.mrb[0].mxu0 %v1249
        %v1301 = vpop.f32.mrb[0].mxu0
        %v1302 = vadd.f32 %v1208, %v1301
        %v1303 = vpop.f32.mrb[0].mxu0
        %v1304 = vpop.f32.mrb[0].mxu0
        %v1305 = vpop.f32.mrb[0].mxu0
        %1306 = vdwg.mxu0
        %vm1307 = vcmp.gt.f32.partialorder %v1286, 20.0
        %vm1308 = vcmp.gt.f32.partialorder %v1289, 20.0
        %vm1309 = vcmp.gt.f32.partialorder %v1294, 20.0
        %vm1310 = vcmp.gt.f32.partialorder %v1297, 20.0
        %vm1311 = vcmp.gt.f32.partialorder %v1302, 20.0
        %v1312 = vmin.f32 %v1286, 20.0
        %v1313 = vmin.f32 %v1289, 20.0
        %v1314 = vmin.f32 %v1294, 20.0
        %v1315 = vmin.f32 %v1297, 20.0
        %v1316 = vmin.f32 %v1302, 20.0
        %v1317 = vmul.f32 %v1312, 1.442695
        %v1318 = vpow.pop %v1317
        %v1319 = vmul.f32 %v1313, 1.442695
        %v1320 = vpow.pop %v1319
        %v1321 = vmul.f32 %v1314, 1.442695
        %v1322 = vpow.pop %v1321
        %v1323 = vmul.f32 %v1315, 1.442695
        %v1324 = vpow.pop %v1323
        %v1325 = vmul.f32 %v1316, 1.442695
        %v1326 = vpow.pop %v1325
        %v1327 = vadd.f32 %v1318, 1.0
        %v1328 = vadd.f32 %v1320, 1.0
        %v1329 = vadd.f32 %v1322, 1.0
        %v1330 = vadd.f32 %v1324, 1.0
        %v1331 = vadd.f32 %v1326, 1.0
        %v1332 = vlog2.pop %v1327
        %v1333 = vmul.f32 %v1332, 0.6931472
        %v1334 = vlog2.pop %v1328
        %v1335 = vmul.f32 %v1334, 0.6931472
        %v1336 = vlog2.pop %v1329
        %v1337 = vmul.f32 %v1336, 0.6931472
        %v1338 = vlog2.pop %v1330
        %v1339 = vmul.f32 %v1338, 0.6931472
        %v1340 = vlog2.pop %v1331
        %v1341 = vmul.f32 %v1340, 0.6931472
        %v1342 = vsel %vm1307, %v1286, %v1333
        %v1343 = vsel %vm1308, %v1289, %v1335
        %v1344 = vsel %vm1309, %v1294, %v1337
        %v1345 = vsel %vm1310, %v1297, %v1339
        %v1346 = vsel %vm1311, %v1302, %v1341
        %1352 = vrot.lane.b32.xlu0 %v1342, 64
        %v1353 = vpop.permute.xlu0 %1352
        %1354 = vrot.lane.b32.xlu0 %v1343, 64
        %v1355 = vpop.permute.xlu0 %1354
        %1356 = vrot.lane.b32.xlu0 %v1344, 64
        %v1357 = vpop.permute.xlu0 %1356
        %1358 = vrot.lane.b32.xlu0 %v1345, 64
        %v1359 = vpop.permute.xlu0 %1358
        %1360 = vrot.lane.b32.xlu0 %v1346, 64
        %v1361 = vpop.permute.xlu0 %1360
        %v1367 = vmul.f32 %v1025, %v1353
        %v1368 = vmul.f32 %v1026, %v1355
        %v1369 = vmul.f32 %v1027, %v1357
        %v1370 = vmul.f32 %v1028, %v1359
        %v1371 = vmul.f32 %v1029, %v1361
        %v1372 = vadd.f32 %v1286, %v1367
        %v1373 = vadd.f32 %v1289, %v1368
        %v1374 = vadd.f32 %v1294, %v1369
        %v1375 = vadd.f32 %v1297, %v1370
        %v1376 = vadd.f32 %v1302, %v1371
        %v1377 = vtanh.pop %v1372
        %v1378 = vtanh.pop %v1373
        %v1379 = vtanh.pop %v1374
        %v1380 = vtanh.pop %v1375
        %v1381 = vtanh.pop %v1376
        %v1382 = vsub.f32 1.0, %v1164
        %v1383 = vsub.f32 1.0, %v1165
        %v1384 = vsub.f32 1.0, %v1166
        %v1385 = vsub.f32 1.0, %v1167
        %v1386 = vsub.f32 1.0, %v1168
        %v1387 = vmul.f32 %v1382, %v1377
        %v1388 = vmul.f32 %v1383, %v1378
        %v1389 = vmul.f32 %v1384, %v1379
        %v1390 = vmul.f32 %v1385, %v1380
        %v1391 = vmul.f32 %v1386, %v1381
        %v1392 = vmul.f32 %v1164, %v1019
        %v1393 = vmul.f32 %v1165, %v1020
        %v1394 = vmul.f32 %v1166, %v1021
        %v1395 = vmul.f32 %v1167, %v1022
        %v1396 = vmul.f32 %v1168, %v1023
        %v1397 = vadd.f32 %v1387, %v1392
        %v1398 = vadd.f32 %v1388, %v1393
        %v1399 = vadd.f32 %v1389, %v1394
        %v1400 = vadd.f32 %v1390, %v1395
        %v1401 = vadd.f32 %v1391, %v1396
        %v1402 = vld [vmem:[#allocation20] sm:$0x1]
        %v1403 = vpack.c.bf16 %v1398, %v1397
        %v1404 = vpack.c.bf16 %v1400, %v1399
        %v1405 = vpack.c.bf16 %v1401, %v1401
        %v1407 = vsel %vm1078, %v1402, 0
        %v1410 = vsel %vm1078, %v1403, 0
        %v1413 = vsel %vm1078, %v1404, 0
        %v1416 = vsel %vm1078, %v1405, 0
        %1418 = vmatprep.subr.bf16.mxu0 0
        %1419 = vmatpush1.bf16.xpose.msra.mxu0 %v1410
        %1420 = vmatprep.subr.bf16.mxu0 0
        %1421 = vmatpush1.bf16.xpose.msra.mxu0 %v1413
        %1422 = vmatprep.subr.bf16.mxu0 0
        %1423 = vmatpush1.bf16.xpose.msra.mxu0 %v1416
        %1424 = vmatprep.subr.bf16.mxu0 0
        %1425 = vmatpush1.bf16.xpose.msra.mxu0 0
        %1426 = vmatprep.subr.bf16.mxu0 0
        %1427 = vmatpush1.bf16.xpose.msra.mxu0 0
        %1428 = vmatprep.subr.bf16.mxu0 0
        %1429 = vmatpush1.bf16.xpose.msra.mxu0 0
        %1430 = vmatprep.subr.bf16.mxu0 0
        %1431 = vmatpush1.bf16.xpose.msra.mxu0 0
        %1432 = vmatprep.subr.bf16.mxu0 0
        %1433 = vmatpush1.bf16.xpose.msra.mxu0 0
        %1434 = vmatprep.subr.bf16.mxu0 0
        %1435 = vmatpush1.bf16.xpose.msra.mxu0 0
        %1436 = vmatprep.subr.bf16.mxu0 0
        %1437 = vmatpush1.bf16.xpose.msra.mxu0 0
        %1438 = vmatprep.subr.bf16.mxu0 0
        %1439 = vmatpush1.bf16.xpose.msra.mxu0 0
        %1440 = vmatprep.subr.bf16.mxu0 0
        %1441 = vmatpush1.bf16.xpose.msra.mxu0 0
        %1442 = vmatprep.subr.bf16.mxu0 0
        %1443 = vmatpush1.bf16.xpose.msra.mxu0 0
        %1444 = vmatprep.subr.bf16.mxu0 0
        %1445 = vmatpush1.bf16.xpose.msra.mxu0 0
        %1446 = vmatprep.subr.bf16.mxu0 0
        %1447 = vmatpush1.bf16.xpose.msra.mxu0 0
        %1448 = vmatprep.subr.bf16.mxu0 0
        %1449 = vmatpush1.bf16.xpose.msra.mxu0 0
        %1450 = vmatprep.mubr.bf16.mxu0 0
        %1451 = vmatmul.mubr.bf16.gmra.mrb[0].mxu0 %v1407
        %v1452 = vpop.f32.mrb[0].mxu0
        %v1453 = vadd.f32 %v1024, %v1452
        %v1454 = vpop.f32.mrb[0].mxu0
        %v1455 = vpop.f32.mrb[0].mxu0
        %v1456 = vpop.f32.mrb[0].mxu0
        %1457 = vdwg.mxu0
        %vm1458 = vcmask 319488
        %v1459 = vsel %vm1458, %v1453, -inf
        %1460 = vmax.xlane.f32.xlu0 %v1459
        %v1461 = vpop.xlane.xlu0 %1460
        %v1462 = vsub.f32 %v1453, %v1461
        %v1463 = vmul.f32 %v1462, 1.442695
        %v1464 = vpow.pop %v1463
        %v1465 = vsel %vm1458, %v1464, 0.0
        %1466 = vadd.xlane.f32.xlu0 %v1465
        %v1467 = vpop.xlane.xlu0 %1466
        %v1468 = vrcp.pop %v1467
        %v1469 = vmul.f32 %v1464, %v1468
        %v1470 = vmul.f32 %v1469, 0.7
        %v1471 = vadd.f32 %v1470, 0.0075
        %v1472 = vpack.c.bf16 %v1471, %v1471
        %v1473 = vunpack.c.l.bf16 %v1472
        %v1474 = vsub.f32 %v1471, %v1473
        %v1475 = vld [vmem:[%s16] sm:$0xff]
        %v1476 = vld [vmem:[%s16 + $0x8] sm:$0xff]
        %v1477 = vld [vmem:[%s16 + $0x10] sm:$0xff]
        %v1478 = vld [vmem:[%s16 + $0x18] sm:$0xff]
        %v1479 = vld [vmem:[%s16 + $0x20] sm:$0xff]
        %vm1480 = vcmask 326656
        %v1482 = vsel %vm1480, %v1474, 0
        %1484 = vmatprep.subr.mxu0 0.0
        %1485 = vmatpush1.msra.mxu0 %v1475
        %1486 = vmatprep.subr.mxu0 0.0
        %1487 = vmatpush1.msra.mxu0 %v1476
        %1488 = vmatprep.subr.mxu0 0.0
        %1489 = vmatpush1.msra.mxu0 %v1477
        %1490 = vmatprep.subr.mxu0 0.0
        %1491 = vmatpush1.msra.mxu0 %v1478
        %1492 = vmatprep.subr.mxu0 0.0
        %1493 = vmatpush1.msra.mxu0 %v1479
        %1494 = vmatprep.subr.mxu0 0.0
        %1495 = vmatpush1.msra.mxu0 0.0
        %1496 = vmatprep.subr.mxu0 0.0
        %1497 = vmatpush1.msra.mxu0 0.0
        %1498 = vmatprep.subr.mxu0 0.0
        %1499 = vmatpush1.msra.mxu0 0.0
        %1500 = vmatprep.subr.mxu0 0.0
        %1501 = vmatpush1.msra.mxu0 0.0
        %1502 = vmatprep.subr.mxu0 0.0
        %1503 = vmatpush1.msra.mxu0 0.0
        %1504 = vmatprep.subr.mxu0 0.0
        %1505 = vmatpush1.msra.mxu0 0.0
        %1506 = vmatprep.subr.mxu0 0.0
        %1507 = vmatpush1.msra.mxu0 0.0
        %1508 = vmatprep.subr.mxu0 0.0
        %1509 = vmatpush1.msra.mxu0 0.0
        %1510 = vmatprep.subr.mxu0 0.0
        %1511 = vmatpush1.msra.mxu0 0.0
        %1512 = vmatprep.subr.mxu0 0.0
        %1513 = vmatpush1.msra.mxu0 0.0
        %1514 = vmatprep.subr.mxu0 0.0
        %1515 = vmatpush1.msra.mxu0 0.0
        %1516 = vmatprep.subr.mxu0 0.0
        %1517 = vmatpush1.msra.mxu0 0.0
        %1518 = vmatprep.subr.mxu0 0.0
        %1519 = vmatpush1.msra.mxu0 0.0
        %1520 = vmatprep.subr.mxu0 0.0
        %1521 = vmatpush1.msra.mxu0 0.0
        %1522 = vmatprep.subr.mxu0 0.0
        %1523 = vmatpush1.msra.mxu0 0.0
        %1524 = vmatprep.subr.mxu0 0.0
        %1525 = vmatpush1.msra.mxu0 0.0
        %1526 = vmatprep.subr.mxu0 0.0
        %1527 = vmatpush1.msra.mxu0 0.0
        %1528 = vmatprep.subr.mxu0 0.0
        %1529 = vmatpush1.msra.mxu0 0.0
        %1530 = vmatprep.subr.mxu0 0.0
        %1531 = vmatpush1.msra.mxu0 0.0
        %1532 = vmatprep.subr.mxu0 0.0
        %1533 = vmatpush1.msra.mxu0 0.0
        %1534 = vmatprep.subr.mxu0 0.0
        %1535 = vmatpush1.msra.mxu0 0.0
        %1536 = vmatprep.subr.mxu0 0.0
        %1537 = vmatpush1.msra.mxu0 0.0
        %1538 = vmatprep.subr.mxu0 0.0
        %1539 = vmatpush1.msra.mxu0 0.0
        %1540 = vmatprep.subr.mxu0 0.0
        %1541 = vmatpush1.msra.mxu0 0.0
        %1542 = vmatprep.subr.mxu0 0.0
        %1543 = vmatpush1.msra.mxu0 0.0
        %1544 = vmatprep.subr.mxu0 0.0
        %1545 = vmatpush1.msra.mxu0 0.0
        %1546 = vmatprep.subr.mxu0 0.0
        %1547 = vmatpush1.msra.mxu0 0.0
        %1548 = vmatprep.mubr.f32.mxu0 0.0
        %1549 = vmatmul.mubr.f32.gmra.mrb[0].mxu0 %v1482
        %v1550 = vpop.f32.mrb[0].mxu0
        %v1551 = vadd.f32 0.0, %v1550
        %v1552 = vpop.f32.mrb[0].mxu0
        %1553 = vdwg.mxu0
        %v1555 = vsel %vm1480, %v1473, 0
        %1557 = vmatprep.subr.mxu0 0.0
        %1558 = vmatpush1.msra.mxu0 %v1475
        %1559 = vmatprep.subr.mxu0 0.0
        %1560 = vmatpush1.msra.mxu0 %v1476
        %1561 = vmatprep.subr.mxu0 0.0
        %1562 = vmatpush1.msra.mxu0 %v1477
        %1563 = vmatprep.subr.mxu0 0.0
        %1564 = vmatpush1.msra.mxu0 %v1478
        %1565 = vmatprep.subr.mxu0 0.0
        %1566 = vmatpush1.msra.mxu0 %v1479
        %1567 = vmatprep.subr.mxu0 0.0
        %1568 = vmatpush1.msra.mxu0 0.0
        %1569 = vmatprep.subr.mxu0 0.0
        %1570 = vmatpush1.msra.mxu0 0.0
        %1571 = vmatprep.subr.mxu0 0.0
        %1572 = vmatpush1.msra.mxu0 0.0
        %1573 = vmatprep.subr.mxu0 0.0
        %1574 = vmatpush1.msra.mxu0 0.0
        %1575 = vmatprep.subr.mxu0 0.0
        %1576 = vmatpush1.msra.mxu0 0.0
        %1577 = vmatprep.subr.mxu0 0.0
        %1578 = vmatpush1.msra.mxu0 0.0
        %1579 = vmatprep.subr.mxu0 0.0
        %1580 = vmatpush1.msra.mxu0 0.0
        %1581 = vmatprep.subr.mxu0 0.0
        %1582 = vmatpush1.msra.mxu0 0.0
        %1583 = vmatprep.subr.mxu0 0.0
        %1584 = vmatpush1.msra.mxu0 0.0
        %1585 = vmatprep.subr.mxu0 0.0
        %1586 = vmatpush1.msra.mxu0 0.0
        %1587 = vmatprep.subr.mxu0 0.0
        %1588 = vmatpush1.msra.mxu0 0.0
        %1589 = vmatprep.subr.mxu0 0.0
        %1590 = vmatpush1.msra.mxu0 0.0
        %1591 = vmatprep.subr.mxu0 0.0
        %1592 = vmatpush1.msra.mxu0 0.0
        %1593 = vmatprep.subr.mxu0 0.0
        %1594 = vmatpush1.msra.mxu0 0.0
        %1595 = vmatprep.subr.mxu0 0.0
        %1596 = vmatpush1.msra.mxu0 0.0
        %1597 = vmatprep.subr.mxu0 0.0
        %1598 = vmatpush1.msra.mxu0 0.0
        %1599 = vmatprep.subr.mxu0 0.0
        %1600 = vmatpush1.msra.mxu0 0.0
        %1601 = vmatprep.subr.mxu0 0.0
        %1602 = vmatpush1.msra.mxu0 0.0
        %1603 = vmatprep.subr.mxu0 0.0
        %1604 = vmatpush1.msra.mxu0 0.0
        %1605 = vmatprep.subr.mxu0 0.0
        %1606 = vmatpush1.msra.mxu0 0.0
        %1607 = vmatprep.subr.mxu0 0.0
        %1608 = vmatpush1.msra.mxu0 0.0
        %1609 = vmatprep.subr.mxu0 0.0
        %1610 = vmatpush1.msra.mxu0 0.0
        %1611 = vmatprep.subr.mxu0 0.0
        %1612 = vmatpush1.msra.mxu0 0.0
        %1613 = vmatprep.subr.mxu0 0.0
        %1614 = vmatpush1.msra.mxu0 0.0
        %1615 = vmatprep.subr.mxu0 0.0
        %1616 = vmatpush1.msra.mxu0 0.0
        %1617 = vmatprep.subr.mxu0 0.0
        %1618 = vmatpush1.msra.mxu0 0.0
        %1619 = vmatprep.subr.mxu0 0.0
        %1620 = vmatpush1.msra.mxu0 0.0
        %1621 = vmatprep.mubr.f32.mxu0 0.0
        %1622 = vmatmul.mubr.f32.gmra.mrb[0].mxu0 %v1555
        %v1623 = vpop.f32.mrb[0].mxu0
        %v1624 = vadd.f32 %v1551, %v1623
        %v1625 = vpop.f32.mrb[0].mxu0
        %1626 = vdwg.mxu0
        %1628 = vset.pattern.permute.xlu0 0
        %1629 = vperm.xlu0 %1628, %v1030
        %v1630 = vpop.permute.xlu0 %1629
        %1633 = vset.pattern.permute.xlu0 0
        %1634 = vperm.xlu0 %1633, %v1031
        %v1635 = vpop.permute.xlu0 %1634
        %1638 = vset.pattern.permute.xlu0 0
        %1639 = vperm.xlu0 %1638, %v1032
        %v1640 = vpop.permute.xlu0 %1639
        %1643 = vset.pattern.permute.xlu0 0
        %1644 = vperm.xlu0 %1643, %v1033
        %v1645 = vpop.permute.xlu0 %1644
        %1648 = vset.pattern.permute.xlu0 0
        %1649 = vperm.xlu0 %1648, %v1034
        %v1650 = vpop.permute.xlu0 %1649
        %v1652 = vlaneseq
        %v1653 = vshrl.u32 %v1652, 7
        %v1654 = vsub.s32 0, %v1653
        %v1655 = vrot.slane %v1624, %v1654
        %vm1656 = vcmp.ge.f32.partialorder %v1630, %v1655
        %vm1657 = vcmp.ge.f32.partialorder %v1635, %v1655
        %vm1658 = vcmp.ge.f32.partialorder %v1640, %v1655
        %vm1659 = vcmp.ge.f32.partialorder %v1645, %v1655
        %vm1660 = vcmp.ge.f32.partialorder %v1650, %v1655
        %v1661 = vsel %vm1656, 1, 0
        %v1662 = vsel %vm1657, 1, 0
        %v1663 = vsel %vm1658, 1, 0
        %v1664 = vsel %vm1659, 1, 0
        %v1665 = vsel %vm1660, 1, 0
        %v1666 = vcvt.s32.f32 %v1661
        %v1667 = vcvt.s32.f32 %v1662
        %v1668 = vcvt.s32.f32 %v1663
        %v1669 = vcvt.s32.f32 %v1664
        %v1670 = vcvt.s32.f32 %v1665
        %v1671 = vsel %vm1480, %v1666, 0.0
        %1672 = vadd.xlane.f32.xlu0 %v1671
        %v1673 = vpop.xlane.xlu0 %1672
        %v1674 = vsel %vm1480, %v1667, 0.0
        %1675 = vadd.xlane.f32.xlu0 %v1674
        %v1676 = vpop.xlane.xlu0 %1675
        %v1677 = vsel %vm1480, %v1668, 0.0
        %1678 = vadd.xlane.f32.xlu0 %v1677
        %v1679 = vpop.xlane.xlu0 %1678
        %v1680 = vsel %vm1480, %v1669, 0.0
        %1681 = vadd.xlane.f32.xlu0 %v1680
        %v1682 = vpop.xlane.xlu0 %1681
        %v1683 = vsel %vm1480, %v1670, 0.0
        %1684 = vadd.xlane.f32.xlu0 %v1683
        %v1685 = vpop.xlane.xlu0 %1684
        %v1686 = vmin.f32 %v1673, 39.0
        %v1687 = vmin.f32 %v1676, 39.0
        %v1688 = vmin.f32 %v1679, 39.0
        %v1689 = vmin.f32 %v1682, 39.0
        %v1690 = vmin.f32 %v1685, 39.0
        %v1691 = vld [vmem:[#allocation26] sm:$0x1]
        %v1693 = vlaneseq
        %v1694 = vshrl.u32 %v1693, 7
        %v1695 = vsub.s32 0, %v1694
        %v1696 = vrot.slane %v1691, %v1695
        %vm1698 = vcmp.eq.f32.partialorder %v1696, %v1686
        %vm1699 = vcmp.eq.f32.partialorder %v1696, %v1687
        %vm1700 = vcmp.eq.f32.partialorder %v1696, %v1688
        %vm1701 = vcmp.eq.f32.partialorder %v1696, %v1689
        %vm1702 = vcmp.eq.f32.partialorder %v1696, %v1690
        %v1703 = vsel %vm1698, 1, 0
        %v1704 = vsel %vm1699, 1, 0
        %v1705 = vsel %vm1700, 1, 0
        %v1706 = vsel %vm1701, 1, 0
        %v1707 = vsel %vm1702, 1, 0
        %v1708 = vcvt.s32.f32 %v1703
        %v1709 = vcvt.s32.f32 %v1704
        %v1710 = vcvt.s32.f32 %v1705
        %v1711 = vcvt.s32.f32 %v1706
        %v1712 = vcvt.s32.f32 %v1707
        %v1713 = vpack.c.bf16 %v1709, %v1708
        %v1714 = vpack.c.bf16 %v1711, %v1710
        %v1715 = vpack.c.bf16 %v1712, %v1712
        %v1717 = vsel %vm1480, %v1713, 0
        %v1720 = vsel %vm1480, %v1714, 0
        %v1723 = vsel %vm1480, %v1715, 0
        %vm1725 = vcmask 1043456
        %v1726 = vsel %vm1725, %v1405, 0
        %1728 = vmatprep.subr.bf16.mxu0 0
        %1729 = vmatpush1.bf16.msra.mxu0 %v1403
        %1730 = vmatprep.subr.bf16.mxu0 0
        %1731 = vmatpush1.bf16.msra.mxu0 %v1404
        %1732 = vmatprep.subr.bf16.mxu0 0
        %1733 = vmatpush1.bf16.msra.mxu0 %v1726
        %1734 = vmatprep.subr.bf16.mxu0 0
        %1735 = vmatpush1.bf16.msra.mxu0 0
        %1736 = vmatprep.subr.bf16.mxu0 0
        %1737 = vmatpush1.bf16.msra.mxu0 0
        %1738 = vmatprep.subr.bf16.mxu0 0
        %1739 = vmatpush1.bf16.msra.mxu0 0
        %1740 = vmatprep.subr.bf16.mxu0 0
        %1741 = vmatpush1.bf16.msra.mxu0 0
        %1742 = vmatprep.subr.bf16.mxu0 0
        %1743 = vmatpush1.bf16.msra.mxu0 0
        %1744 = vmatprep.subr.bf16.mxu0 0
        %1745 = vmatpush1.bf16.msra.mxu0 0
        %1746 = vmatprep.subr.bf16.mxu0 0
        %1747 = vmatpush1.bf16.msra.mxu0 0
        %1748 = vmatprep.subr.bf16.mxu0 0
        %1749 = vmatpush1.bf16.msra.mxu0 0
        %1750 = vmatprep.subr.bf16.mxu0 0
        %1751 = vmatpush1.bf16.msra.mxu0 0
        %1752 = vmatprep.subr.bf16.mxu0 0
        %1753 = vmatpush1.bf16.msra.mxu0 0
        %1754 = vmatprep.subr.bf16.mxu0 0
        %1755 = vmatpush1.bf16.msra.mxu0 0
        %1756 = vmatprep.subr.bf16.mxu0 0
        %1757 = vmatpush1.bf16.msra.mxu0 0
        %1758 = vmatprep.subr.bf16.mxu0 0
        %1759 = vmatpush1.bf16.msra.mxu0 0
        %1760 = vmatprep.mubr.bf16.mxu0 0
        %1761 = vmatmul.mubr.bf16.gmra.mrb[0].mxu0 %v1717
        %v1762 = vpop.f32.mrb[0].mxu0
        %v1763 = vadd.f32 0.0, %v1762
        %v1764 = vpop.f32.mrb[0].mxu0
        %v1765 = vpop.f32.mrb[0].mxu0
        %v1766 = vadd.f32 0.0, %v1765
        %v1767 = vpop.f32.mrb[0].mxu0
        %1768 = vmatprep.mubr.bf16.mxu0 0
        %1769 = vmatmul.mubr.bf16.gmra.mrb[0].mxu0 %v1720
        %v1770 = vpop.f32.mrb[0].mxu0
        %v1771 = vadd.f32 0.0, %v1770
        %v1772 = vpop.f32.mrb[0].mxu0
        %v1773 = vpop.f32.mrb[0].mxu0
        %v1774 = vadd.f32 0.0, %v1773
        %v1775 = vpop.f32.mrb[0].mxu0
        %1776 = vmatprep.mubr.bf16.mxu0 0
        %1777 = vmatmul.mubr.bf16.gmra.mrb[0].mxu0 %v1723
        %v1778 = vpop.f32.mrb[0].mxu0
        %v1779 = vadd.f32 0.0, %v1778
        %v1780 = vpop.f32.mrb[0].mxu0
        %v1781 = vpop.f32.mrb[0].mxu0
        %v1782 = vpop.f32.mrb[0].mxu0
        %1783 = vdwg.mxu0
        %v1785 = vsel %vm1480, %v1469, 0
        %v1788 = vsel %vm1480, %v1708, 0
        %v1791 = vsel %vm1480, %v1709, 0
        %v1794 = vsel %vm1480, %v1710, 0
        %v1797 = vsel %vm1480, %v1711, 0
        %v1800 = vsel %vm1480, %v1712, 0
        %1802 = vmatprep.subr.mxu0 0.0
        %1803 = vmatpush1.xpose.msra.mxu0 %v1788
        %1804 = vmatprep.subr.mxu0 0.0
        %1805 = vmatpush1.xpose.msra.mxu0 %v1791
        %1806 = vmatprep.subr.mxu0 0.0
        %1807 = vmatpush1.xpose.msra.mxu0 %v1794
        %1808 = vmatprep.subr.mxu0 0.0
        %1809 = vmatpush1.xpose.msra.mxu0 %v1797
        %1810 = vmatprep.subr.mxu0 0.0
        %1811 = vmatpush1.xpose.msra.mxu0 %v1800
        %1812 = vmatprep.subr.mxu0 0.0
        %1813 = vmatpush1.xpose.msra.mxu0 0.0
        %1814 = vmatprep.subr.mxu0 0.0
        %1815 = vmatpush1.xpose.msra.mxu0 0.0
        %1816 = vmatprep.subr.mxu0 0.0
        %1817 = vmatpush1.xpose.msra.mxu0 0.0
        %1818 = vmatprep.subr.mxu0 0.0
        %1819 = vmatpush1.xpose.msra.mxu0 0.0
        %1820 = vmatprep.subr.mxu0 0.0
        %1821 = vmatpush1.xpose.msra.mxu0 0.0
        %1822 = vmatprep.subr.mxu0 0.0
        %1823 = vmatpush1.xpose.msra.mxu0 0.0
        %1824 = vmatprep.subr.mxu0 0.0
        %1825 = vmatpush1.xpose.msra.mxu0 0.0
        %1826 = vmatprep.subr.mxu0 0.0
        %1827 = vmatpush1.xpose.msra.mxu0 0.0
        %1828 = vmatprep.subr.mxu0 0.0
        %1829 = vmatpush1.xpose.msra.mxu0 0.0
        %1830 = vmatprep.subr.mxu0 0.0
        %1831 = vmatpush1.xpose.msra.mxu0 0.0
        %1832 = vmatprep.subr.mxu0 0.0
        %1833 = vmatpush1.xpose.msra.mxu0 0.0
        %1834 = vmatprep.subr.mxu0 0.0
        %1835 = vmatpush1.xpose.msra.mxu0 0.0
        %1836 = vmatprep.subr.mxu0 0.0
        %1837 = vmatpush1.xpose.msra.mxu0 0.0
        %1838 = vmatprep.subr.mxu0 0.0
        %1839 = vmatpush1.xpose.msra.mxu0 0.0
        %1840 = vmatprep.subr.mxu0 0.0
        %1841 = vmatpush1.xpose.msra.mxu0 0.0
        %1842 = vmatprep.subr.mxu0 0.0
        %1843 = vmatpush1.xpose.msra.mxu0 0.0
        %1844 = vmatprep.subr.mxu0 0.0
        %1845 = vmatpush1.xpose.msra.mxu0 0.0
        %1846 = vmatprep.subr.mxu0 0.0
        %1847 = vmatpush1.xpose.msra.mxu0 0.0
        %1848 = vmatprep.subr.mxu0 0.0
        %1849 = vmatpush1.xpose.msra.mxu0 0.0
        %1850 = vmatprep.subr.mxu0 0.0
        %1851 = vmatpush1.xpose.msra.mxu0 0.0
        %1852 = vmatprep.subr.mxu0 0.0
        %1853 = vmatpush1.xpose.msra.mxu0 0.0
        %1854 = vmatprep.subr.mxu0 0.0
        %1855 = vmatpush1.xpose.msra.mxu0 0.0
        %1856 = vmatprep.subr.mxu0 0.0
        %1857 = vmatpush1.xpose.msra.mxu0 0.0
        %1858 = vmatprep.subr.mxu0 0.0
        %1859 = vmatpush1.xpose.msra.mxu0 0.0
        %1860 = vmatprep.subr.mxu0 0.0
        %1861 = vmatpush1.xpose.msra.mxu0 0.0
        %1862 = vmatprep.subr.mxu0 0.0
        %1863 = vmatpush1.xpose.msra.mxu0 0.0
        %1864 = vmatprep.subr.mxu0 0.0
        %1865 = vmatpush1.xpose.msra.mxu0 0.0
        %1866 = vmatprep.mubr.f32.mxu0 0.0
        %1867 = vmatmul.mubr.f32.gmra.mrb[0].mxu0 %v1785
        %v1868 = vpop.f32.mrb[0].mxu0
        %v1869 = vadd.f32 0.0, %v1868
        %v1870 = vpop.f32.mrb[0].mxu0
        %1871 = vdwg.mxu0
        %v1872 = vsel %vm1480, %v1691, 0
        %1874 = vmatprep.subr.mxu0 0.0
        %1875 = vmatpush1.xpose.msra.mxu0 %v1788
        %1876 = vmatprep.subr.mxu0 0.0
        %1877 = vmatpush1.xpose.msra.mxu0 %v1791
        %1878 = vmatprep.subr.mxu0 0.0
        %1879 = vmatpush1.xpose.msra.mxu0 %v1794
        %1880 = vmatprep.subr.mxu0 0.0
        %1881 = vmatpush1.xpose.msra.mxu0 %v1797
        %1882 = vmatprep.subr.mxu0 0.0
        %1883 = vmatpush1.xpose.msra.mxu0 %v1800
        %1884 = vmatprep.subr.mxu0 0.0
        %1885 = vmatpush1.xpose.msra.mxu0 0.0
        %1886 = vmatprep.subr.mxu0 0.0
        %1887 = vmatpush1.xpose.msra.mxu0 0.0
        %1888 = vmatprep.subr.mxu0 0.0
        %1889 = vmatpush1.xpose.msra.mxu0 0.0
        %1890 = vmatprep.subr.mxu0 0.0
        %1891 = vmatpush1.xpose.msra.mxu0 0.0
        %1892 = vmatprep.subr.mxu0 0.0
        %1893 = vmatpush1.xpose.msra.mxu0 0.0
        %1894 = vmatprep.subr.mxu0 0.0
        %1895 = vmatpush1.xpose.msra.mxu0 0.0
        %1896 = vmatprep.subr.mxu0 0.0
        %1897 = vmatpush1.xpose.msra.mxu0 0.0
        %1898 = vmatprep.subr.mxu0 0.0
        %1899 = vmatpush1.xpose.msra.mxu0 0.0
        %1900 = vmatprep.subr.mxu0 0.0
        %1901 = vmatpush1.xpose.msra.mxu0 0.0
        %1902 = vmatprep.subr.mxu0 0.0
        %1903 = vmatpush1.xpose.msra.mxu0 0.0
        %1904 = vmatprep.subr.mxu0 0.0
        %1905 = vmatpush1.xpose.msra.mxu0 0.0
        %1906 = vmatprep.subr.mxu0 0.0
        %1907 = vmatpush1.xpose.msra.mxu0 0.0
        %1908 = vmatprep.subr.mxu0 0.0
        %1909 = vmatpush1.xpose.msra.mxu0 0.0
        %1910 = vmatprep.subr.mxu0 0.0
        %1911 = vmatpush1.xpose.msra.mxu0 0.0
        %1912 = vmatprep.subr.mxu0 0.0
        %1913 = vmatpush1.xpose.msra.mxu0 0.0
        %1914 = vmatprep.subr.mxu0 0.0
        %1915 = vmatpush1.xpose.msra.mxu0 0.0
        %1916 = vmatprep.subr.mxu0 0.0
        %1917 = vmatpush1.xpose.msra.mxu0 0.0
        %1918 = vmatprep.subr.mxu0 0.0
        %1919 = vmatpush1.xpose.msra.mxu0 0.0
        %1920 = vmatprep.subr.mxu0 0.0
        %1921 = vmatpush1.xpose.msra.mxu0 0.0
        %1922 = vmatprep.subr.mxu0 0.0
        %1923 = vmatpush1.xpose.msra.mxu0 0.0
        %1924 = vmatprep.subr.mxu0 0.0
        %1925 = vmatpush1.xpose.msra.mxu0 0.0
        %1926 = vmatprep.subr.mxu0 0.0
        %1927 = vmatpush1.xpose.msra.mxu0 0.0
        %1928 = vmatprep.subr.mxu0 0.0
        %1929 = vmatpush1.xpose.msra.mxu0 0.0
        %1930 = vmatprep.subr.mxu0 0.0
        %1931 = vmatpush1.xpose.msra.mxu0 0.0
        %1932 = vmatprep.subr.mxu0 0.0
        %1933 = vmatpush1.xpose.msra.mxu0 0.0
        %1934 = vmatprep.subr.mxu0 0.0
        %1935 = vmatpush1.xpose.msra.mxu0 0.0
        %1936 = vmatprep.subr.mxu0 0.0
        %1937 = vmatpush1.xpose.msra.mxu0 0.0
        %1938 = vmatprep.mubr.f32.mxu0 0.0
        %1939 = vmatmul.mubr.f32.gmra.mrb[0].mxu0 %v1872
        %v1940 = vpop.f32.mrb[0].mxu0
        %v1941 = vadd.f32 0.0, %v1940
        %v1942 = vpop.f32.mrb[0].mxu0
        %1943 = vdwg.mxu0
        %v1944 = vmul.f32 %v1869, 0.7
        %v1945 = vadd.f32 %v1944, 0.0075
        %v1946 = vrcp.pop %v1945
        %v1947 = vmul.f32 %v1869, %v1946
        %v1948 = vsel %vm1458, %v1947, 0.0
        %1949 = vadd.xlane.f32.xlu0 %v1948
        %v1950 = vpop.xlane.xlu0 %1949
        %v1951 = vrcp.pop %v1950
        %v1952 = vmul.f32 %v1947, %v1951
        %v1953 = vlog2.pop %v1952
        %v1954 = vmul.f32 %v1953, 0.6931472
        %v1955 = vpack.c.bf16 %v1952, %v1952
        %v1956 = vpack.c.bf16 %v1766, %v1763
        %v1957 = vpack.c.bf16 %v1774, %v1771
        %v1958 = vpack.c.bf16 %v1779, %v1779
        %v1960 = vsel %vm1480, %v1955, 0
        %v1963 = vsel %vm1725, %v1958, 0
        %1965 = vmatprep.subr.bf16.mxu0 0
        %1966 = vmatpush1.bf16.msra.mxu0 %v1956
        %1967 = vmatprep.subr.bf16.mxu0 0
        %1968 = vmatpush1.bf16.msra.mxu0 %v1957
        %1969 = vmatprep.subr.bf16.mxu0 0
        %1970 = vmatpush1.bf16.msra.mxu0 %v1963
        %1971 = vmatprep.subr.bf16.mxu0 0
        %1972 = vmatpush1.bf16.msra.mxu0 0
        %1973 = vmatprep.subr.bf16.mxu0 0
        %1974 = vmatpush1.bf16.msra.mxu0 0
        %1975 = vmatprep.subr.bf16.mxu0 0
        %1976 = vmatpush1.bf16.msra.mxu0 0
        %1977 = vmatprep.subr.bf16.mxu0 0
        %1978 = vmatpush1.bf16.msra.mxu0 0
        %1979 = vmatprep.subr.bf16.mxu0 0
        %1980 = vmatpush1.bf16.msra.mxu0 0
        %1981 = vmatprep.subr.bf16.mxu0 0
        %1982 = vmatpush1.bf16.msra.mxu0 0
        %1983 = vmatprep.subr.bf16.mxu0 0
        %1984 = vmatpush1.bf16.msra.mxu0 0
        %1985 = vmatprep.subr.bf16.mxu0 0
        %1986 = vmatpush1.bf16.msra.mxu0 0
        %1987 = vmatprep.subr.bf16.mxu0 0
        %1988 = vmatpush1.bf16.msra.mxu0 0
        %1989 = vmatprep.subr.bf16.mxu0 0
        %1990 = vmatpush1.bf16.msra.mxu0 0
        %1991 = vmatprep.subr.bf16.mxu0 0
        %1992 = vmatpush1.bf16.msra.mxu0 0
        %1993 = vmatprep.subr.bf16.mxu0 0
        %1994 = vmatpush1.bf16.msra.mxu0 0
        %1995 = vmatprep.subr.bf16.mxu0 0
        %1996 = vmatpush1.bf16.msra.mxu0 0
        %1997 = vmatprep.mubr.bf16.mxu0 0
        %1998 = vmatmul.mubr.bf16.gmra.mrb[0].mxu0 %v1960
        %v1999 = vpop.f32.mrb[0].mxu0
        %v2000 = vadd.f32 0.0, %v1999
        %v2001 = vpop.f32.mrb[0].mxu0
        %v2002 = vpop.f32.mrb[0].mxu0
        %v2003 = vpop.f32.mrb[0].mxu0
        %2004 = vdwg.mxu0
        %v2005 = vpack.c.bf16 %v2000, %v2000
        %v2006 = vld [vmem:[%s12] sm:$0xf]
        %v2007 = vld [vmem:[%s12 + $0x4] sm:$0xf]
        %v2008 = vld [vmem:[%s12 + $0x8] sm:$0xf]
        %v2009 = vld [vmem:[%s12 + $0xc] sm:$0xf]
        %v2010 = vld [vmem:[%s12 + $0x10] sm:$0xf]
        %v2011 = vld [vmem:[%s12 + $0x14] sm:$0xf]
        %v2012 = vld [vmem:[%s12 + $0x18] sm:$0xf]
        %v2013 = vld [vmem:[%s12 + $0x1c] sm:$0xf]
        %v2014 = vld [vmem:[#allocation21] sm:$0x1]
        %v2023 = vunpack.c.l.b16 %v2006
        %v2024 = vunpack.c.l.b16 %v2007
        %v2025 = vunpack.c.l.b16 %v2008
        %v2026 = vunpack.c.l.b16 %v2009
        %v2027 = vunpack.c.l.b16 %v2010
        %v2028 = vunpack.c.l.b16 %v2011
        %v2029 = vunpack.c.l.b16 %v2012
        %v2030 = vunpack.c.l.b16 %v2013
        %v2031 = vpack.c.b16 %v2024, %v2023
        %v2032 = vpack.c.b16 %v2026, %v2025
        %v2033 = vpack.c.b16 %v2028, %v2027
        %v2034 = vpack.c.b16 %v2030, %v2029
        %v2040 = vsel %vm1078, %v2005, 0
        %2042 = vmatprep.subr.bf16.mxu0 0
        %2043 = vmatpush1.bf16.msra.mxu0 %v2031
        %2044 = vmatprep.subr.bf16.mxu0 0
        %2045 = vmatpush1.bf16.msra.mxu0 %v2032
        %2046 = vmatprep.subr.bf16.mxu0 0
        %2047 = vmatpush1.bf16.msra.mxu0 %v2033
        %2048 = vmatprep.subr.bf16.mxu0 0
        %2049 = vmatpush1.bf16.msra.mxu0 %v2034
        %2050 = vmatprep.subr.bf16.mxu0 0
        %2051 = vmatpush1.bf16.msra.mxu0 0
        %2052 = vmatprep.subr.bf16.mxu0 0
        %2053 = vmatpush1.bf16.msra.mxu0 0
        %2054 = vmatprep.subr.bf16.mxu0 0
        %2055 = vmatpush1.bf16.msra.mxu0 0
        %2056 = vmatprep.subr.bf16.mxu0 0
        %2057 = vmatpush1.bf16.msra.mxu0 0
        %2058 = vmatprep.subr.bf16.mxu0 0
        %2059 = vmatpush1.bf16.msra.mxu0 0
        %2060 = vmatprep.subr.bf16.mxu0 0
        %2061 = vmatpush1.bf16.msra.mxu0 0
        %2062 = vmatprep.subr.bf16.mxu0 0
        %2063 = vmatpush1.bf16.msra.mxu0 0
        %2064 = vmatprep.subr.bf16.mxu0 0
        %2065 = vmatpush1.bf16.msra.mxu0 0
        %2066 = vmatprep.subr.bf16.mxu0 0
        %2067 = vmatpush1.bf16.msra.mxu0 0
        %2068 = vmatprep.subr.bf16.mxu0 0
        %2069 = vmatpush1.bf16.msra.mxu0 0
        %2070 = vmatprep.subr.bf16.mxu0 0
        %2071 = vmatpush1.bf16.msra.mxu0 0
        %2072 = vmatprep.subr.bf16.mxu0 0
        %2073 = vmatpush1.bf16.msra.mxu0 0
        %2074 = vmatprep.mubr.bf16.mxu0 0
        %2075 = vmatmul.mubr.bf16.gmra.mrb[0].mxu0 %v2040
        %v2076 = vpop.f32.mrb[0].mxu0
        %v2077 = vadd.f32 %v2014, %v2076
        %v2078 = vpop.f32.mrb[0].mxu0
        %v2079 = vpop.f32.mrb[0].mxu0
        %v2080 = vpop.f32.mrb[0].mxu0
        %2081 = vdwg.mxu0
        %v2082 = vmax.f32 %v2077, 0.0
        %v2083 = vpack.c.bf16 %v2082, %v2082
        %v2084 = vld [vmem:[#allocation23] sm:$0xf]
        %v2085 = vld [vmem:[#allocation23 + $0x4] sm:$0xf]
        %v2086 = vld [vmem:[#allocation23 + $0x8] sm:$0xf]
        %v2087 = vld [vmem:[#allocation24] sm:$0x1]
        %v2091 = vunpack.c.l.b16 %v2084
        %v2092 = vunpack.c.l.b16 %v2085
        %v2093 = vunpack.c.l.b16 %v2086
        %v2094 = vpack.c.b16 %v2092, %v2091
        %v2095 = vpack.c.b16 %v2093, %v2093
        %vm2097 = vcmask 195584
        %v2099 = vsel %vm2097, %v2083, 0
        %v2102 = vsel %vm1725, %v2095, 0
        %2104 = vmatprep.subr.bf16.mxu0 0
        %2105 = vmatpush1.bf16.msra.mxu0 %v2094
        %2106 = vmatprep.subr.bf16.mxu0 0
        %2107 = vmatpush1.bf16.msra.mxu0 %v2102
        %2108 = vmatprep.subr.bf16.mxu0 0
        %2109 = vmatpush1.bf16.msra.mxu0 0
        %2110 = vmatprep.subr.bf16.mxu0 0
        %2111 = vmatpush1.bf16.msra.mxu0 0
        %2112 = vmatprep.subr.bf16.mxu0 0
        %2113 = vmatpush1.bf16.msra.mxu0 0
        %2114 = vmatprep.subr.bf16.mxu0 0
        %2115 = vmatpush1.bf16.msra.mxu0 0
        %2116 = vmatprep.subr.bf16.mxu0 0
        %2117 = vmatpush1.bf16.msra.mxu0 0
        %2118 = vmatprep.subr.bf16.mxu0 0
        %2119 = vmatpush1.bf16.msra.mxu0 0
        %2120 = vmatprep.subr.bf16.mxu0 0
        %2121 = vmatpush1.bf16.msra.mxu0 0
        %2122 = vmatprep.subr.bf16.mxu0 0
        %2123 = vmatpush1.bf16.msra.mxu0 0
        %2124 = vmatprep.subr.bf16.mxu0 0
        %2125 = vmatpush1.bf16.msra.mxu0 0
        %2126 = vmatprep.subr.bf16.mxu0 0
        %2127 = vmatpush1.bf16.msra.mxu0 0
        %2128 = vmatprep.subr.bf16.mxu0 0
        %2129 = vmatpush1.bf16.msra.mxu0 0
        %2130 = vmatprep.subr.bf16.mxu0 0
        %2131 = vmatpush1.bf16.msra.mxu0 0
        %2132 = vmatprep.subr.bf16.mxu0 0
        %2133 = vmatpush1.bf16.msra.mxu0 0
        %2134 = vmatprep.subr.bf16.mxu0 0
        %2135 = vmatpush1.bf16.msra.mxu0 0
        %2136 = vmatprep.mubr.bf16.mxu0 0
        %2137 = vmatmul.mubr.bf16.gmra.mrb[0].mxu0 %v2099
        %v2138 = vpop.f32.mrb[0].mxu0
        %v2139 = vadd.f32 %v2087, %v2138
        %v2140 = vpop.f32.mrb[0].mxu0
        %v2141 = vpop.f32.mrb[0].mxu0
        %v2142 = vpop.f32.mrb[0].mxu0
        %2143 = vdwg.mxu0
        %v2144 = vmax.f32 %v2139, 0.0
        %2145 = vst.msk [vmem:[#allocation2] sm:$0xff] %vm1078, %v1763
        %2146 = vst.msk [vmem:[#allocation2 + $0x8] sm:$0xff] %vm1078, %v1766
        %2147 = vst.msk [vmem:[#allocation2 + $0x10] sm:$0xff] %vm1078, %v1771
        %2148 = vst.msk [vmem:[#allocation2 + $0x18] sm:$0xff] %vm1078, %v1774
        %2149 = vst.msk [vmem:[#allocation2 + $0x20] sm:$0xff] %vm1078, %v1779
        %2150 = vst.msk [vmem:[#allocation3] sm:$0x1] %vm1458, %v1954
        %2151 = vst.msk [vmem:[#allocation27] sm:$0xff] %vm1078, %v1763
        %2152 = vst.msk [vmem:[#allocation27 + $0x8] sm:$0xff] %vm1078, %v1766
        %2153 = vst.msk [vmem:[#allocation27 + $0x10] sm:$0xff] %vm1078, %v1771
        %2154 = vst.msk [vmem:[#allocation27 + $0x18] sm:$0xff] %vm1078, %v1774
        %2155 = vst.msk [vmem:[#allocation27 + $0x20] sm:$0xff] %vm1078, %v1779
        %2156 = vst.msk [vmem:[#allocation28] sm:$0x1] %vm1458, %v1954
        %v2157 = vld [vmem:[%s18] sm:$0xff]
        %v2158 = vld [vmem:[%s18 + $0x8] sm:$0xff]
        %v2159 = vld [vmem:[%s18 + $0x10] sm:$0xff]
        %v2160 = vld [vmem:[%s18 + $0x18] sm:$0xff]
        %v2161 = vld [vmem:[%s18 + $0x20] sm:$0xff]
        %v2163 = vsel %vm1480, %v1941, 0
        %2165 = vmatprep.subr.mxu0 0.0
        %2166 = vmatpush1.msra.mxu0 %v2157
        %2167 = vmatprep.subr.mxu0 0.0
        %2168 = vmatpush1.msra.mxu0 %v2158
        %2169 = vmatprep.subr.mxu0 0.0
        %2170 = vmatpush1.msra.mxu0 %v2159
        %2171 = vmatprep.subr.mxu0 0.0
        %2172 = vmatpush1.msra.mxu0 %v2160
        %2173 = vmatprep.subr.mxu0 0.0
        %2174 = vmatpush1.msra.mxu0 %v2161
        %2175 = vmatprep.subr.mxu0 0.0
        %2176 = vmatpush1.msra.mxu0 0.0
        %2177 = vmatprep.subr.mxu0 0.0
        %2178 = vmatpush1.msra.mxu0 0.0
        %2179 = vmatprep.subr.mxu0 0.0
        %2180 = vmatpush1.msra.mxu0 0.0
        %2181 = vmatprep.subr.mxu0 0.0
        %2182 = vmatpush1.msra.mxu0 0.0
        %2183 = vmatprep.subr.mxu0 0.0
        %2184 = vmatpush1.msra.mxu0 0.0
        %2185 = vmatprep.subr.mxu0 0.0
        %2186 = vmatpush1.msra.mxu0 0.0
        %2187 = vmatprep.subr.mxu0 0.0
        %2188 = vmatpush1.msra.mxu0 0.0
        %2189 = vmatprep.subr.mxu0 0.0
        %2190 = vmatpush1.msra.mxu0 0.0
        %2191 = vmatprep.subr.mxu0 0.0
        %2192 = vmatpush1.msra.mxu0 0.0
        %2193 = vmatprep.subr.mxu0 0.0
        %2194 = vmatpush1.msra.mxu0 0.0
        %2195 = vmatprep.subr.mxu0 0.0
        %2196 = vmatpush1.msra.mxu0 0.0
        %2197 = vmatprep.subr.mxu0 0.0
        %2198 = vmatpush1.msra.mxu0 0.0
        %2199 = vmatprep.subr.mxu0 0.0
        %2200 = vmatpush1.msra.mxu0 0.0
        %2201 = vmatprep.subr.mxu0 0.0
        %2202 = vmatpush1.msra.mxu0 0.0
        %2203 = vmatprep.subr.mxu0 0.0
        %2204 = vmatpush1.msra.mxu0 0.0
        %2205 = vmatprep.subr.mxu0 0.0
        %2206 = vmatpush1.msra.mxu0 0.0
        %2207 = vmatprep.subr.mxu0 0.0
        %2208 = vmatpush1.msra.mxu0 0.0
        %2209 = vmatprep.subr.mxu0 0.0
        %2210 = vmatpush1.msra.mxu0 0.0
        %2211 = vmatprep.subr.mxu0 0.0
        %2212 = vmatpush1.msra.mxu0 0.0
        %2213 = vmatprep.subr.mxu0 0.0
        %2214 = vmatpush1.msra.mxu0 0.0
        %2215 = vmatprep.subr.mxu0 0.0
        %2216 = vmatpush1.msra.mxu0 0.0
        %2217 = vmatprep.subr.mxu0 0.0
        %2218 = vmatpush1.msra.mxu0 0.0
        %2219 = vmatprep.subr.mxu0 0.0
        %2220 = vmatpush1.msra.mxu0 0.0
        %2221 = vmatprep.subr.mxu0 0.0
        %2222 = vmatpush1.msra.mxu0 0.0
        %2223 = vmatprep.subr.mxu0 0.0
        %2224 = vmatpush1.msra.mxu0 0.0
        %2225 = vmatprep.subr.mxu0 0.0
        %2226 = vmatpush1.msra.mxu0 0.0
        %2227 = vmatprep.subr.mxu0 0.0
        %2228 = vmatpush1.msra.mxu0 0.0
        %2229 = vmatprep.mubr.f32.mxu0 0.0
        %2230 = vmatmul.mubr.f32.gmra.mrb[0].mxu0 %v2163
        %v2231 = vpop.f32.mrb[0].mxu0
        %v2232 = vadd.f32 %v2144, %v2231
        %v2233 = vpop.f32.mrb[0].mxu0
        %2234 = vdwg.mxu0
        %2235 = vst [vmem:[%s826] sm:$0x1] %v2232
        %s2236 = sand.u32 %s42, 1
        %s2237 = scalar_lea.sflag [#allocation8], %s2236
        %s2238 = sand.u32 %s501, 1
        %s2239 = scalar_lea.vmem [#allocation30], %s2238
        // Predicated region
        $region153: #{tpu_custom_call.1} parent=95 // pred_check
          %p2240 = pneg %p464
        $region154: #{tpu_custom_call.1} parent=95 // pred_check_branch
          %2242 = sbr.rel (%p2240) target = $region156
        $region155: #{tpu_custom_call.1} parent=95 // pred_region
          %s2244 = ssub.s32 640, 640
          %2245 = vsyncadd [#allocation8], %s2244
          %s2246 = sshll.u32 [#allocation27], 4
          %s2247 = int_to_ptr.vmem [resolvable:$true] %s2246
          %2252 = dma.vmem_to_hbm [thread:$0]  %s2247, 640, %s19, [#allocation8], 128, 128, 8
        $region156: #{tpu_custom_call.1} parent=95 // pred_fallthru
          _
        // Predicated region
        $region157: #{tpu_custom_call.1} parent=95 // pred_check
          %p2253 = pneg %p485
        $region158: #{tpu_custom_call.1} parent=95 // pred_check_branch
          %2255 = sbr.rel (%p2253) target = $region160
        $region159: #{tpu_custom_call.1} parent=95 // pred_region
          %s2257 = ssub.s32 16, 16
          %2258 = vsyncadd [#allocation29], %s2257
          %s2260 = sshll.u32 [#allocation28], 4
          %s2261 = int_to_ptr.vmem [resolvable:$true] %s2260
          %2263 = dma.vmem_to_hbm [thread:$0]  %s2261, 16, %s20, [#allocation29]
        $region160: #{tpu_custom_call.1} parent=95 // pred_fallthru
          _
        // Predicated region
        $region161: #{tpu_custom_call.1} parent=95 // pred_check
          %p2264 = pneg %p511
        $region162: #{tpu_custom_call.1} parent=95 // pred_check_branch
          %2266 = sbr.rel (%p2264) target = $region164
        $region163: #{tpu_custom_call.1} parent=95 // pred_region
          %s2268 = ssub.s32 16, 16
          %2269 = vsyncadd %s2237, %s2268
          %s2270 = smul.addr %s42, 16
          %s2271 = scalar_lea.hbm %s21, %s2270
          %s2273 = sshll.u32 %s2239, 4
          %s2274 = int_to_ptr.vmem [resolvable:$true] %s2273
          %2276 = dma.vmem_to_hbm [thread:$0]  %s2274, 16, %s2271, %s2237
        $region164: #{tpu_custom_call.1} parent=95 // pred_fallthru
          _
        // Predicated region
        $region165: #{tpu_custom_call.1} parent=95 // pred_check
          %p2277 = pneg %p464
        $region166: #{tpu_custom_call.1} parent=95 // pred_check_branch
          %2279 = sbr.rel (%p2277) target = $region168
        $region167: #{tpu_custom_call.1} parent=95 // pred_region
          %2280 = dma.done [#allocation8], 640
        $region168: #{tpu_custom_call.1} parent=95 // pred_fallthru
          _
        // Predicated region
        $region169: #{tpu_custom_call.1} parent=95 // pred_check
          %p2281 = pneg %p485
        $region170: #{tpu_custom_call.1} parent=95 // pred_check_branch
          %2283 = sbr.rel (%p2281) target = $region172
        $region171: #{tpu_custom_call.1} parent=95 // pred_region
          %2284 = dma.done [#allocation29], 16
        $region172: #{tpu_custom_call.1} parent=95 // pred_fallthru
          _
      $region96: #{tpu_custom_call.1} parent=5 // pred_fallthru
        _
      %p2285 = scmp.le.s32.totalorder 2, %s37
      // Predicated region
      $region173: #{tpu_custom_call.1} parent=5 // pred_check
        %p2286 = pneg %p2285
      $region174: #{tpu_custom_call.1} parent=5 // pred_check_branch
        %2288 = sbr.rel (%p2286) target = $region176
      $region175: #{tpu_custom_call.1} parent=5 // pred_region
        %s2289 = ssub.s32 %s37, 2
        // Predicated region
        $region177: #{tpu_custom_call.1} parent=175 // pred_check
          %p2290 = pneg %p517
        $region178: #{tpu_custom_call.1} parent=175 // pred_check_branch
          %2292 = sbr.rel (%p2290) target = $region180
        $region179: #{tpu_custom_call.1} parent=175 // pred_region
          %s2293 = sand.u32 %s43, 1
          %s2294 = scalar_lea.sflag [#allocation8], %s2293
          %s2295 = sand.u32 %s502, 1
          %s2296 = scalar_lea.vmem [#allocation30], %s2295
          %2297 = dma.done %s2294, 16
        $region180: #{tpu_custom_call.1} parent=175 // pred_fallthru
          _
      $region176: #{tpu_custom_call.1} parent=5 // pred_fallthru
        _
    $region6: #{tpu_custom_call.1} parent=1 // loop_footer
      %s41 = sadd.s32 1, %s37
    $region7: #{tpu_custom_call.1} parent=1 // loop_footer_branch
      %36 = sbr.rel target = $region3
    $region8: #{tpu_custom_call.1} parent=1 // loop_exit
      _
    %2298 = vsyncpa [#allocation7], 1
    %s2299 = scalar_lea.sflag [#allocation7], 1
    %2300 = vsyncpa %s2299, 1
    %2301 = vsyncpa [#allocation10], 1
    %2302 = vsyncpa [#allocation13], 1
    %2303 = vsyncpa [#allocation16], 1
    %2304 = vsyncpa [#allocation19], 1
    %2305 = vsyncpa [#allocation22], 1
    %2306 = vsyncpa [#allocation25], 1
    %2307 = vsyncpa [#allocation8], 1
    %s2308 = scalar_lea.sflag [#allocation8], 1
    %2309 = vsyncpa %s2308, 1
    %2310 = vsyncpa [#allocation29], 1

</llo_original>
